<compile_context>
chip_gen: v7x
topology: tpu7x:2x2x1
jax: 0.10.0
libtpu: 0.0.40
codegen_flags: <defaults>
</compile_context>

<pallas_src>
import functools
import numpy as np
import jax
import jax.numpy as jnp
from jax.experimental import pallas as pl
from jax.experimental.pallas import tpu as pltpu

LANE = 128


def transformer_pooling_kernel(lens_smem, lens_lane_ref, x_ref, wkv_ref, e_ref,
                               wf_ref, w1_ref, w2_ref, bias_ref,
                               out_ref, m_sc, l_sc, acc_sc, *, d_valid):
    n, Dp = x_ref.shape          # n = Bt * St
    Bt = out_ref.shape[0]
    St = n // Bt
    Hp = e_ref.shape[0]
    Fp = w1_ref.shape[1]
    t = pl.program_id(1)
    num_t = pl.num_programs(1)

    @pl.when(t == 0)
    def _init():
        m_sc[...] = jnp.full(m_sc.shape, -1e30, m_sc.dtype)
        l_sc[...] = jnp.zeros(l_sc.shape, l_sc.dtype)
        acc_sc[...] = jnp.zeros(acc_sc.shape, acc_sc.dtype)

    # ---- scalar unit: max valid length inside this batch block (chunk skip) ----
    row0 = pl.program_id(0) * Bt
    max_len = lens_smem[row0]
    for r in range(1, Bt):
        max_len = jnp.maximum(max_len, lens_smem[row0 + r])

    @pl.when(jnp.logical_or(t == 0, t * St < max_len))
    def _accumulate():
        bias = bias_ref[...]
        x = x_ref[...]                                       # (n, Dp) bf16, 2-D, MXU-ready
        # fused scores | values projection
        proj = jnp.dot(x, wkv_ref[...], preferred_element_type=jnp.float32)   # (n, Hp+Dp)
        scores = (proj[:, :Hp] + bias[0:1, :Hp]).reshape(Bt, St, Hp)
        values = (proj[:, Hp:] + bias[1:2, :Dp]).reshape(Bt, St, Dp)

        # sequence mask: one iota, one compare, one select
        pos = t * St + jax.lax.broadcasted_iota(jnp.int32, (Bt, St, Hp), 1)
        lens = lens_lane_ref[...][:, None, :]                # (Bt, 1, Hp) int32
        scores = jnp.where(pos >= lens, jnp.float32(-1e18), scores)

        # online softmax over the sequence (per head lane)
        m_prev = m_sc[...]                                   # (Bt, Hp)
        m_new = jnp.maximum(m_prev, jnp.max(scores, axis=1))
        alpha = jnp.exp(m_prev - m_new)                      # (Bt, Hp)
        p = jnp.exp(scores - m_new[:, None, :])              # (Bt, St, Hp)
        l_sc[...] = alpha * l_sc[...] + jnp.sum(p, axis=1)
        m_sc[...] = m_new

        # expand per-head attention / rescale factors to Dp columns via 0/1 matrix E
        e16 = e_ref[...]
        pe = jnp.dot(p.reshape(n, Hp).astype(jnp.bfloat16), e16,
                     preferred_element_type=jnp.float32)     # (n, Dp)
        ae = jnp.dot(alpha, e16.astype(jnp.float32),
                     preferred_element_type=jnp.float32)     # (Bt, Dp), exact (E is 0/1)
        acc_sc[...] = ae * acc_sc[...] + jnp.sum(pe.reshape(Bt, St, Dp) * values, axis=1)

    @pl.when(t == num_t - 1)
    def _epilogue():
        bias = bias_ref[...]
        inv_l = pl.reciprocal(l_sc[...], approx=True)        # EUP slot
        le = jnp.dot(inv_l, e_ref[...].astype(jnp.float32),
                     preferred_element_type=jnp.float32)     # (Bt, Dp)
        ctx = acc_sc[...] * le
        # final pooling linear (rows pre-permuted in the wrapper to absorb unshape())
        context = jnp.dot(ctx.astype(jnp.bfloat16), wf_ref[...],
                          preferred_element_type=jnp.float32) + bias[2:3, :Dp]

        # LayerNorm over the d_valid real lanes (padded lanes explicitly masked)
        lane = jax.lax.broadcasted_iota(jnp.int32, (1, Dp), 1)
        valid = lane < d_valid
        inv_d = jnp.float32(1.0 / d_valid)
        mu = jnp.sum(jnp.where(valid, context, 0.0), axis=-1, keepdims=True) * inv_d
        diff = jnp.where(valid, context - mu, 0.0)
        var = jnp.sum(diff * diff, axis=-1, keepdims=True) * inv_d
        xn = diff * jax.lax.rsqrt(var + jnp.float32(1e-6)) * bias[3:4, :Dp] + bias[4:5, :Dp]

        # FFN + residual.  TODO(synk): nn.Dropout layers are identity (eval mode).
        inter = jnp.maximum(
            jnp.dot(xn.astype(jnp.bfloat16), w1_ref[...],
                    preferred_element_type=jnp.float32) + bias[5:6, :Fp], 0.0)
        out = (jnp.dot(inter.astype(jnp.bfloat16), w2_ref[...],
                       preferred_element_type=jnp.float32) + bias[6:7, :Dp] + context)
        out_ref[...] = out                                   # lane-dense (Bt, Dp) store


def _round_up(v, m):
    return ((v + m - 1) // m) * m


def transformer_pooling_layer(x, lengths, params, heads, *, block_b=8, block_s=None):
    """x: (B, S, D) f32, lengths: (B,) int (valid tokens per row). Returns (B, D) f32."""
    Wk, bk, Wv, bv, Wf, bf, g, beta, W1, b1, W2, b2 = params        # PyTorch (out, in) layouts
    B, S, D = x.shape
    d_ff = W1.shape[0]
    assert D % heads == 0
    dph = D // heads

    Dp = _round_up(D, LANE)
    Fp = _round_up(d_ff, LANE)
    Hp = _round_up(heads, LANE)          # softmax runs on Hp lanes (not Dp)
    Bt = block_b                         # production: >=128 (v5e) / >=256 (v6e, v7x)
    Bp = _round_up(B, Bt)
    St = S if block_s is None else block_s   # production: multiple of 16, S % St == 0
    assert S % St == 0
    T = S // St
    Wmax = max(Hp, Dp, Fp)

    # ---- weights (bf16 on the MXU; padded columns / rows are exact zeros) ----
    def pad2(w, r, c):
        w = jnp.asarray(w, jnp.float32)
        return jnp.pad(w, ((0, r - w.shape[0]), (0, c - w.shape[1])))

    wk = pad2(jnp.asarray(Wk).T, Dp, Hp)                              # (Dp, Hp)
    wv = pad2(jnp.asarray(Wv).T, Dp, Dp)                              # (Dp, Dp)
    wkv = jnp.concatenate([wk, wv], axis=1).astype(jnp.bfloat16)      # fused [Wk | Wv]

    # head-expansion matrix: column h*dph+j <- head h   (0/1 values, exact in bf16)
    e_np = np.zeros((Hp, Dp), np.float32)
    for h in range(heads):
        e_np[h, h * dph:(h + 1) * dph] = 1.0
    e_mat = jnp.asarray(e_np, jnp.bfloat16)

    # absorb MultiHeadedPooling.unshape() transpose into Wf's rows
    q = np.arange(D)
    perm = (q % dph) * heads + (q // dph)
    wf = pad2(jnp.asarray(Wf).T[perm, :], Dp, Dp).astype(jnp.bfloat16)
    w1 = pad2(jnp.asarray(W1).T, Dp, Fp).astype(jnp.bfloat16)
    w2 = pad2(jnp.asarray(W2).T, Fp, Dp).astype(jnp.bfloat16)

    # all bias / gain vectors packed into one (8, Wmax) f32 slab (single DMA)
    def row(v):
        v = jnp.asarray(v, jnp.float32).reshape(-1)
        return jnp.pad(v, (0, Wmax - v.shape[0]))
    bias_slab = jnp.stack([row(bk), row(bv), row(bf), row(g), row(beta),
                           row(b1), row(b2), jnp.zeros((Wmax,), jnp.float32)])

    # ---- activations ----
    x_p = jnp.pad(jnp.asarray(x, jnp.float32),
                  ((0, Bp - B), (0, 0), (0, Dp - D))).astype(jnp.bfloat16)
    # (T, Bp*St, Dp): each (b, t) grid step loads a lane/sublane-dense 2-D block
    x2 = x_p.reshape(Bp, T, St, Dp).transpose(1, 0, 2, 3).reshape(T, Bp * St, Dp)

    lens_p = jnp.pad(jnp.asarray(lengths, jnp.int32), (0, Bp - B))    # SMEM (scalar prefetch)
    lens_lane = jnp.broadcast_to(lens_p[:, None], (Bp, Hp))           # lane-dense int32 copy

    tensor_args = (lens_lane, x2, wkv, e_mat, wf, w1, w2, bias_slab)

    # NOTE: weight/bias index_maps are constant so Pallas does not re-DMA them per step.
    # TODO(synk): on v7x add pipeline_mode=pl.Buffered(1) to the constant specs (and
    # consider fp8 w1/w2) to halve their VMEM footprint at production sizes.
    in_specs = [
        pl.BlockSpec((Bt, Hp), lambda b, t, lens: (b, 0)),                    # lens_lane
        pl.BlockSpec((None, Bt * St, Dp), lambda b, t, lens: (t, b, 0)),      # x (2-D block)
        pl.BlockSpec(wkv.shape, lambda b, t, lens: (0, 0)),
        pl.BlockSpec(e_mat.shape, lambda b, t, lens: (0, 0)),
        pl.BlockSpec(wf.shape, lambda b, t, lens: (0, 0)),
        pl.BlockSpec(w1.shape, lambda b, t, lens: (0, 0)),
        pl.BlockSpec(w2.shape, lambda b, t, lens: (0, 0)),
        pl.BlockSpec(bias_slab.shape, lambda b, t, lens: (0, 0)),
    ]
    out_specs = pl.BlockSpec((Bt, Dp), lambda b, t, lens: (b, 0))

    # ---- VMEM budget from actual block sizes, clamped for v7x's 64 MiB / TC ----
    blk_bytes = (2 * Bt * St * Dp * 2                         # x (double-buffered, bf16)
                 + 2 * Bt * Hp * 4                            # lens_lane
                 + 2 * Bt * Dp * 4                            # out
                 + 2 * sum(int(np.prod(a.shape)) * a.dtype.itemsize
                           for a in (wkv, e_mat, wf, w1, w2, bias_slab))
                 + (2 * Bt * Hp + Bt * Dp) * 4)               # scratch
    vmem_limit = int(max(32 * 1024 * 1024, min(2 * blk_bytes, 48 * 1024 * 1024)))

    flops = (2 * Bp * S * Dp * (Hp + Dp)     # fused projection
             + 2 * Bp * S * Hp * Dp          # attention expansion
             + 2 * Bp * Dp * Dp              # Wf
             + 4 * Bp * Dp * Fp)             # FFN
    transcendentals = Bp * S * Hp + 2 * Bp * T * Hp + Bp * Hp
    bytes_accessed = int(sum(int(np.prod(a.shape)) * a.dtype.itemsize for a in tensor_args)
                         + Bp * 4 + Bp * Dp * 4)
    cost = pl.CostEstimate(flops=int(flops), transcendentals=int(transcendentals),
                           bytes_accessed=bytes_accessed)

    kernel = functools.partial(transformer_pooling_kernel, d_valid=D)

    out = pl.pallas_call(
        kernel,
        out_shape=jax.ShapeDtypeStruct((Bp, Dp), jnp.float32),
        grid_spec=pltpu.PrefetchScalarGridSpec(
            num_scalar_prefetch=1,
            grid=(Bp // Bt, T),
            in_specs=in_specs,
            out_specs=out_specs,
            scratch_shapes=[pltpu.VMEM((Bt, Hp), jnp.float32),   # running max
                            pltpu.VMEM((Bt, Hp), jnp.float32),   # running denominator
                            pltpu.VMEM((Bt, Dp), jnp.float32)],  # running weighted sum
        ),
        compiler_params=pltpu.CompilerParams(
            dimension_semantics=("parallel", "arbitrary"),
            vmem_limit_bytes=vmem_limit,
        ),
        cost_estimate=cost,
    )(lens_p, *tensor_args)
    return out[:B, :D]


def reference(x, mask_bool, params, heads):
    """Pure-JAX f32 transcription of the PyTorch forward (eval mode)."""
    Wk, bk, Wv, bv, Wf, bf, g, beta, W1, b1, W2, b2 = params
    B, S, D = x.shape
    dph = D // heads
    scores = x @ Wk.T + bk                                                   # (B, S, H)
    values = x @ Wv.T + bv                                                   # (B, S, D)
    scores = jnp.transpose(scores.reshape(B, S, heads, 1), (0, 2, 1, 3))[..., 0]   # (B, H, S)
    values = jnp.transpose(values.reshape(B, S, heads, dph), (0, 2, 1, 3))         # (B, H, S, dph)
    scores = jnp.where(mask_bool[:, None, :], -1e18, scores)
    attn = jax.nn.softmax(scores, axis=-1)
    ctx = jnp.sum(attn[..., None] * values, axis=-2)                         # (B, H, dph)
    u = jnp.transpose(ctx, (0, 2, 1)).reshape(B, D)                          # unshape + squeeze
    context = u @ Wf.T + bf
    mu = context.mean(-1, keepdims=True)
    var = jnp.mean(jnp.square(context - mu), -1, keepdims=True)
    xn = (context - mu) / jnp.sqrt(var + 1e-6) * g + beta
    inter = jax.nn.relu(xn @ W1.T + b1)
    return inter @ W2.T + b2 + context


if __name__ == "__main__":
    B, S, D, heads, d_ff = 16, 8, 32, 4, 64

    key = jax.random.PRNGKey(0)
    keys = jax.random.split(key, 16)

    def init(k, shape, scale=0.05):
        return scale * jax.random.normal(k, shape, dtype=jnp.float32)

    Wk = init(keys[0], (heads, D));  bk = init(keys[1], (heads,))
    Wv = init(keys[2], (D, D));      bv = init(keys[3], (D,))
    Wf = init(keys[4], (D, D));      bf = init(keys[5], (D,))
    g  = 1.0 + init(keys[6], (D,));  beta = init(keys[7], (D,))
    W1 = init(keys[8], (d_ff, D));   b1 = init(keys[9], (d_ff,))
    W2 = init(keys[10], (D, d_ff));  b2 = init(keys[11], (D,))
    params = (Wk, bk, Wv, bv, Wf, bf, g, beta, W1, b1, W2, b2)

    x = jax.random.normal(keys[12], (B, S, D), dtype=jnp.float32)
    # deterministic per-row valid lengths in [1, S]
    lengths = (jnp.arange(B) % S) + 1
    mask_bool = jnp.arange(S)[None, :] >= lengths[:, None]                   # (B, S), True = pad

    # NOTE: toy benchmark (grid = 2 x 1) is overhead-bound; block_b stays 8 so the batch
    # grid remains an even 2 (both v7x TensorCores get work).  Raise block_b at prod sizes.
    out = transformer_pooling_layer(x, lengths, params, heads, block_b=8)
    out = jax.block_until_ready(out)

    ref = jax.block_until_ready(reference(x, mask_bool, params, heads))
    # bf16 weights/activations with f32 accumulation + approx reciprocal -> loose tolerance
    np.testing.assert_allclose(np.asarray(out), np.asarray(ref), rtol=2e-2, atol=2e-2)

    print("KERNEL_OK")
</pallas_src>

<mosaic_0001>
module attributes {stable_mosaic.version = 11 : i64} {
  func.func @transformer_pooling_kernel(%arg0: i32, %arg1: i32, %arg2: memref<16xi32, #tpu.memory_space<smem>>, %arg3: memref<8x128xi32, #tpu.memory_space<vmem>>, %arg4: memref<1x64x128xbf16, #tpu.memory_space<vmem>>, %arg5: memref<128x256xbf16, #tpu.memory_space<vmem>>, %arg6: memref<128x128xbf16, #tpu.memory_space<vmem>>, %arg7: memref<128x128xbf16, #tpu.memory_space<vmem>>, %arg8: memref<128x128xbf16, #tpu.memory_space<vmem>>, %arg9: memref<128x128xbf16, #tpu.memory_space<vmem>>, %arg10: memref<8x128xf32, #tpu.memory_space<vmem>>, %arg11: memref<8x128xf32, #tpu.memory_space<vmem>>, %arg12: memref<8x128xf32, #tpu.memory_space<vmem>>, %arg13: memref<8x128xf32, #tpu.memory_space<vmem>>, %arg14: memref<8x128xf32, #tpu.memory_space<vmem>>) attributes {dimension_semantics = [#tpu.dimension_semantics<parallel>, #tpu.dimension_semantics<arbitrary>], iteration_bounds = array<i64: 2, 1>, scalar_prefetch = 1 : i64, scratch_operands = 3 : i64, tpu.core_type = #tpu.core_type<tc>, window_params = [{transform_indices = @transform_0, window_bounds = array<i64: 8, 128>}, {transform_indices = @transform_1, window_bounds = array<i64: 1, 64, 128>}, {pipeline_mode = #tpu.pipeline_mode<synchronous>, transform_indices = @transform_2, window_bounds = array<i64: 128, 256>}, {pipeline_mode = #tpu.pipeline_mode<synchronous>, transform_indices = @transform_3, window_bounds = array<i64: 128, 128>}, {pipeline_mode = #tpu.pipeline_mode<synchronous>, transform_indices = @transform_4, window_bounds = array<i64: 128, 128>}, {pipeline_mode = #tpu.pipeline_mode<synchronous>, transform_indices = @transform_5, window_bounds = array<i64: 128, 128>}, {pipeline_mode = #tpu.pipeline_mode<synchronous>, transform_indices = @transform_6, window_bounds = array<i64: 128, 128>}, {pipeline_mode = #tpu.pipeline_mode<synchronous>, transform_indices = @transform_7, window_bounds = array<i64: 8, 128>}, {transform_indices = @transform_8, window_bounds = array<i64: 8, 128>}]} {
    %c0_i32 = arith.constant 0 : i32
    %0 = arith.cmpi eq, %arg1, %c0_i32 : i32
    %1 = arith.extui %0 : i1 to i32
    %c0_i32_0 = arith.constant 0 : i32
    %2 = arith.cmpi ne, %1, %c0_i32_0 : i32
    scf.if %2 {
      %cst = arith.constant -1.000000e+30 : f32
      %43 = vector.broadcast %cst : f32 to vector<8x128xf32>
      %c0 = arith.constant 0 : index
      %c0_6 = arith.constant 0 : index
      %44 = vector.load %arg12[%c0, %c0_6] : memref<8x128xf32, #tpu.memory_space<vmem>>, vector<8x128xf32>
      tpu.vector_store %arg12[%c0, %c0_6], %43 {strides = array<i32>} : memref<8x128xf32, #tpu.memory_space<vmem>>, vector<8x128xf32>,
      %cst_7 = arith.constant 0.000000e+00 : f32
      %45 = vector.broadcast %cst_7 : f32 to vector<8x128xf32>
      %c0_8 = arith.constant 0 : index
      %c0_9 = arith.constant 0 : index
      %46 = vector.load %arg13[%c0_8, %c0_9] : memref<8x128xf32, #tpu.memory_space<vmem>>, vector<8x128xf32>
      tpu.vector_store %arg13[%c0_8, %c0_9], %45 {strides = array<i32>} : memref<8x128xf32, #tpu.memory_space<vmem>>, vector<8x128xf32>,
      %cst_10 = arith.constant 0.000000e+00 : f32
      %47 = vector.broadcast %cst_10 : f32 to vector<8x128xf32>
      %c0_11 = arith.constant 0 : index
      %c0_12 = arith.constant 0 : index
      %48 = vector.load %arg14[%c0_11, %c0_12] : memref<8x128xf32, #tpu.memory_space<vmem>>, vector<8x128xf32>
      tpu.vector_store %arg14[%c0_11, %c0_12], %47 {strides = array<i32>} : memref<8x128xf32, #tpu.memory_space<vmem>>, vector<8x128xf32>,
    } else {
    }
    %c8_i32 = arith.constant 8 : i32
    %3 = arith.muli %arg0, %c8_i32 : i32
    %4 = arith.index_cast %3 : i32 to index
    %5 = memref.load %arg2[%4] : memref<16xi32, #tpu.memory_space<smem>>
    %c1_i32 = arith.constant 1 : i32
    %6 = arith.addi %3, %c1_i32 : i32
    %7 = arith.index_cast %6 : i32 to index
    %8 = memref.load %arg2[%7] : memref<16xi32, #tpu.memory_space<smem>>
    %9 = arith.maxsi %5, %8 : i32
    %c2_i32 = arith.constant 2 : i32
    %10 = arith.addi %3, %c2_i32 : i32
    %11 = arith.index_cast %10 : i32 to index
    %12 = memref.load %arg2[%11] : memref<16xi32, #tpu.memory_space<smem>>
    %13 = arith.maxsi %9, %12 : i32
    %c3_i32 = arith.constant 3 : i32
    %14 = arith.addi %3, %c3_i32 : i32
    %15 = arith.index_cast %14 : i32 to index
    %16 = memref.load %arg2[%15] : memref<16xi32, #tpu.memory_space<smem>>
    %17 = arith.maxsi %13, %16 : i32
    %c4_i32 = arith.constant 4 : i32
    %18 = arith.addi %3, %c4_i32 : i32
    %19 = arith.index_cast %18 : i32 to index
    %20 = memref.load %arg2[%19] : memref<16xi32, #tpu.memory_space<smem>>
    %21 = arith.maxsi %17, %20 : i32
    %c5_i32 = arith.constant 5 : i32
    %22 = arith.addi %3, %c5_i32 : i32
    %23 = arith.index_cast %22 : i32 to index
    %24 = memref.load %arg2[%23] : memref<16xi32, #tpu.memory_space<smem>>
    %25 = arith.maxsi %21, %24 : i32
    %c6_i32 = arith.constant 6 : i32
    %26 = arith.addi %3, %c6_i32 : i32
    %27 = arith.index_cast %26 : i32 to index
    %28 = memref.load %arg2[%27] : memref<16xi32, #tpu.memory_space<smem>>
    %29 = arith.maxsi %25, %28 : i32
    %c7_i32 = arith.constant 7 : i32
    %30 = arith.addi %3, %c7_i32 : i32
    %31 = arith.index_cast %30 : i32 to index
    %32 = memref.load %arg2[%31] : memref<16xi32, #tpu.memory_space<smem>>
    %33 = arith.maxsi %29, %32 : i32
    %c0_i32_1 = arith.constant 0 : i32
    %34 = arith.cmpi eq, %arg1, %c0_i32_1 : i32
    %c8_i32_2 = arith.constant 8 : i32
    %35 = arith.muli %arg1, %c8_i32_2 : i32
    %36 = arith.cmpi slt, %35, %33 : i32
    %37 = arith.ori %34, %36 : i1
    %38 = arith.extui %37 : i1 to i32
    %c0_i32_3 = arith.constant 0 : i32
    %39 = arith.cmpi ne, %38, %c0_i32_3 : i32
    scf.if %39 {
      %c0 = arith.constant 0 : index
      %c0_6 = arith.constant 0 : index
      %43 = vector.load %arg10[%c0, %c0_6] : memref<8x128xf32, #tpu.memory_space<vmem>>, vector<8x128xf32>
      %c0_7 = arith.constant 0 : index
      %c0_8 = arith.constant 0 : index
      %c0_9 = arith.constant 0 : index
      %44 = vector.load %arg4[%c0_7, %c0_8, %c0_9] : memref<1x64x128xbf16, #tpu.memory_space<vmem>>, vector<1x64x128xbf16>
      %45 = vector.shape_cast %44 : vector<1x64x128xbf16> to vector<64x128xbf16>
      %c0_10 = arith.constant 0 : index
      %c0_11 = arith.constant 0 : index
      %46 = vector.load %arg5[%c0_10, %c0_11] : memref<128x256xbf16, #tpu.memory_space<vmem>>, vector<128x256xbf16>
      %cst = arith.constant dense<0.000000e+00> : vector<64x256xf32>
      %47 = tpu.matmul %45, %46, %cst {dimension_numbers = #tpu.dot_dimension_numbers<[1], [0], [0], [1], [0, 0, 1, 1], [], []>} : vector<64x128xbf16>, vector<128x256xbf16>, vector<64x256xf32> -> vector<64x256xf32>
      %48 = vector.extract_strided_slice %47 {offsets = [0, 0], sizes = [64, 128], strides = [1, 1]} : vector<64x256xf32> to vector<64x128xf32>
      %49 = vector.extract_strided_slice %43 {offsets = [0, 0], sizes = [1, 128], strides = [1, 1]} : vector<8x128xf32> to vector<1x128xf32>
      %50 = vector.broadcast %49 : vector<1x128xf32> to vector<64x128xf32>
      %51 = arith.addf %48, %50 : vector<64x128xf32>
      %52 = vector.shape_cast %51 : vector<64x128xf32> to vector<8x8x128xf32>
      %53 = vector.extract_strided_slice %47 {offsets = [0, 128], sizes = [64, 128], strides = [1, 1]} : vector<64x256xf32> to vector<64x128xf32>
      %54 = vector.extract_strided_slice %43 {offsets = [1, 0], sizes = [1, 128], strides = [1, 1]} : vector<8x128xf32> to vector<1x128xf32>
      %55 = vector.broadcast %54 : vector<1x128xf32> to vector<64x128xf32>
      %56 = arith.addf %53, %55 : vector<64x128xf32>
      %57 = vector.shape_cast %56 : vector<64x128xf32> to vector<8x8x128xf32>
      %c8_i32_12 = arith.constant 8 : i32
      %58 = arith.muli %arg1, %c8_i32_12 : i32
      %59 = tpu.iota {dimensions = array<i32: 1>} : vector<8x8x128xi32>
      %60 = vector.broadcast %58 : i32 to vector<8x8x128xi32>
      %61 = arith.addi %60, %59 : vector<8x8x128xi32>
      %c0_13 = arith.constant 0 : index
      %c0_14 = arith.constant 0 : index
      %62 = vector.load %arg3[%c0_13, %c0_14] : memref<8x128xi32, #tpu.memory_space<vmem>>, vector<8x128xi32>
      %63 = vector.shape_cast %62 : vector<8x128xi32> to vector<8x1x128xi32>
      %64 = vector.broadcast %63 : vector<8x1x128xi32> to vector<8x8x128xi32>
      %65 = arith.cmpi sge, %61, %64 : vector<8x8x128xi32>
      %cst_15 = arith.constant -9.99999984E+17 : f32
      %66 = vector.broadcast %cst_15 : f32 to vector<8x8x128xf32>
      %67 = arith.select %65, %66, %52 : vector<8x8x128xi1>, vector<8x8x128xf32>
      %c0_16 = arith.constant 0 : index
      %c0_17 = arith.constant 0 : index
      %68 = vector.load %arg12[%c0_16, %c0_17] : memref<8x128xf32, #tpu.memory_space<vmem>>, vector<8x128xf32>
      %cst_18 = arith.constant dense<0xFF800000> : vector<8x128xf32>
      %69 = vector.multi_reduction <maximumf>, %67, %cst_18 [1] : vector<8x8x128xf32> to vector<8x128xf32>
      %70 = arith.maximumf %68, %69 : vector<8x128xf32>
      %71 = arith.subf %68, %70 : vector<8x128xf32>
      %72 = math.exp %71 : vector<8x128xf32>
      %73 = vector.shape_cast %70 : vector<8x128xf32> to vector<8x1x128xf32>
      %74 = vector.broadcast %73 : vector<8x1x128xf32> to vector<8x8x128xf32>
      %75 = arith.subf %67, %74 : vector<8x8x128xf32>
      %76 = math.exp %75 : vector<8x8x128xf32>
      %c0_19 = arith.constant 0 : index
      %c0_20 = arith.constant 0 : index
      %77 = vector.load %arg13[%c0_19, %c0_20] : memref<8x128xf32, #tpu.memory_space<vmem>>, vector<8x128xf32>
      %78 = arith.mulf %72, %77 : vector<8x128xf32>
      %cst_21 = arith.constant dense<0.000000e+00> : vector<8x128xf32>
      %79 = vector.multi_reduction <add>, %76, %cst_21 [1] : vector<8x8x128xf32> to vector<8x128xf32>
      %80 = arith.addf %78, %79 : vector<8x128xf32>
      %c0_22 = arith.constant 0 : index
      %c0_23 = arith.constant 0 : index
      %81 = vector.load %arg13[%c0_22, %c0_23] : memref<8x128xf32, #tpu.memory_space<vmem>>, vector<8x128xf32>
      tpu.vector_store %arg13[%c0_22, %c0_23], %80 {strides = array<i32>} : memref<8x128xf32, #tpu.memory_space<vmem>>, vector<8x128xf32>,
      %c0_24 = arith.constant 0 : index
      %c0_25 = arith.constant 0 : index
      %82 = vector.load %arg12[%c0_24, %c0_25] : memref<8x128xf32, #tpu.memory_space<vmem>>, vector<8x128xf32>
      tpu.vector_store %arg12[%c0_24, %c0_25], %70 {strides = array<i32>} : memref<8x128xf32, #tpu.memory_space<vmem>>, vector<8x128xf32>,
      %c0_26 = arith.constant 0 : index
      %c0_27 = arith.constant 0 : index
      %83 = vector.load %arg6[%c0_26, %c0_27] : memref<128x128xbf16, #tpu.memory_space<vmem>>, vector<128x128xbf16>
      %84 = vector.shape_cast %76 : vector<8x8x128xf32> to vector<64x128xf32>
      %85 = arith.truncf %84 : vector<64x128xf32> to vector<64x128xbf16>
      %cst_28 = arith.constant dense<0.000000e+00> : vector<64x128xf32>
      %86 = tpu.matmul %85, %83, %cst_28 {dimension_numbers = #tpu.dot_dimension_numbers<[1], [0], [0], [1], [0, 0, 1, 1], [], []>} : vector<64x128xbf16>, vector<128x128xbf16>, vector<64x128xf32> -> vector<64x128xf32>
      %87 = arith.extf %83 : vector<128x128xbf16> to vector<128x128xf32>
      %cst_29 = arith.constant dense<0.000000e+00> : vector<8x128xf32>
      %88 = tpu.matmul %72, %87, %cst_29 {dimension_numbers = #tpu.dot_dimension_numbers<[1], [0], [0], [1], [0, 0, 1, 1], [], []>} : vector<8x128xf32>, vector<128x128xf32>, vector<8x128xf32> -> vector<8x128xf32>
      %c0_30 = arith.constant 0 : index
      %c0_31 = arith.constant 0 : index
      %89 = vector.load %arg14[%c0_30, %c0_31] : memref<8x128xf32, #tpu.memory_space<vmem>>, vector<8x128xf32>
      %90 = arith.mulf %88, %89 : vector<8x128xf32>
      %91 = vector.shape_cast %86 : vector<64x128xf32> to vector<8x8x128xf32>
      %92 = arith.mulf %91, %57 : vector<8x8x128xf32>
      %cst_32 = arith.constant dense<0.000000e+00> : vector<8x128xf32>
      %93 = vector.multi_reduction <add>, %92, %cst_32 [1] : vector<8x8x128xf32> to vector<8x128xf32>
      %94 = arith.addf %90, %93 : vector<8x128xf32>
      %c0_33 = arith.constant 0 : index
      %c0_34 = arith.constant 0 : index
      %95 = vector.load %arg14[%c0_33, %c0_34] : memref<8x128xf32, #tpu.memory_space<vmem>>, vector<8x128xf32>
      tpu.vector_store %arg14[%c0_33, %c0_34], %94 {strides = array<i32>} : memref<8x128xf32, #tpu.memory_space<vmem>>, vector<8x128xf32>,
    } else {
    }
    %c0_i32_4 = arith.constant 0 : i32
    %40 = arith.cmpi eq, %arg1, %c0_i32_4 : i32
    %41 = arith.extui %40 : i1 to i32
    %c0_i32_5 = arith.constant 0 : i32
    %42 = arith.cmpi ne, %41, %c0_i32_5 : i32
    scf.if %42 {
      %c0 = arith.constant 0 : index
      %c0_6 = arith.constant 0 : index
      %43 = vector.load %arg10[%c0, %c0_6] : memref<8x128xf32, #tpu.memory_space<vmem>>, vector<8x128xf32>
      %c0_7 = arith.constant 0 : index
      %c0_8 = arith.constant 0 : index
      %44 = vector.load %arg13[%c0_7, %c0_8] : memref<8x128xf32, #tpu.memory_space<vmem>>, vector<8x128xf32>
      %45 = tpu.reciprocal %44 {approx = true} : vector<8x128xf32> -> vector<8x128xf32>
      %c0_9 = arith.constant 0 : index
      %c0_10 = arith.constant 0 : index
      %46 = vector.load %arg6[%c0_9, %c0_10] : memref<128x128xbf16, #tpu.memory_space<vmem>>, vector<128x128xbf16>
      %47 = arith.extf %46 : vector<128x128xbf16> to vector<128x128xf32>
      %cst = arith.constant dense<0.000000e+00> : vector<8x128xf32>
      %48 = tpu.matmul %45, %47, %cst {dimension_numbers = #tpu.dot_dimension_numbers<[1], [0], [0], [1], [0, 0, 1, 1], [], []>} : vector<8x128xf32>, vector<128x128xf32>, vector<8x128xf32> -> vector<8x128xf32>
      %c0_11 = arith.constant 0 : index
      %c0_12 = arith.constant 0 : index
      %49 = vector.load %arg14[%c0_11, %c0_12] : memref<8x128xf32, #tpu.memory_space<vmem>>, vector<8x128xf32>
      %50 = arith.mulf %49, %48 : vector<8x128xf32>
      %51 = arith.truncf %50 : vector<8x128xf32> to vector<8x128xbf16>
      %c0_13 = arith.constant 0 : index
      %c0_14 = arith.constant 0 : index
      %52 = vector.load %arg7[%c0_13, %c0_14] : memref<128x128xbf16, #tpu.memory_space<vmem>>, vector<128x128xbf16>
      %cst_15 = arith.constant dense<0.000000e+00> : vector<8x128xf32>
      %53 = tpu.matmul %51, %52, %cst_15 {dimension_numbers = #tpu.dot_dimension_numbers<[1], [0], [0], [1], [0, 0, 1, 1], [], []>} : vector<8x128xbf16>, vector<128x128xbf16>, vector<8x128xf32> -> vector<8x128xf32>
      %54 = vector.extract_strided_slice %43 {offsets = [2, 0], sizes = [1, 128], strides = [1, 1]} : vector<8x128xf32> to vector<1x128xf32>
      %55 = vector.broadcast %54 : vector<1x128xf32> to vector<8x128xf32>
      %56 = arith.addf %53, %55 : vector<8x128xf32>
      %57 = tpu.iota {dimensions = array<i32: 1>} : vector<1x128xi32>
      %c32_i32 = arith.constant 32 : i32
      %58 = vector.broadcast %c32_i32 : i32 to vector<1x128xi32>
      %59 = arith.cmpi slt, %57, %58 : vector<1x128xi32>
      %cst_16 = arith.constant 0.000000e+00 : f32
      %60 = vector.shape_cast %59 : vector<1x128xi1> to vector<1x128xi1>
      %61 = vector.broadcast %60 : vector<1x128xi1> to vector<8x128xi1>
      %62 = vector.broadcast %cst_16 : f32 to vector<8x128xf32>
      %63 = arith.select %61, %56, %62 : vector<8x128xi1>, vector<8x128xf32>
      %cst_17 = arith.constant dense<0.000000e+00> : vector<8xf32>
      %64 = vector.multi_reduction <add>, %63, %cst_17 [1] : vector<8x128xf32> to vector<8xf32>
      %65 = vector.shape_cast %64 : vector<8xf32> to vector<8x1xf32>
      %cst_18 = arith.constant 3.125000e-02 : f32
      %66 = vector.broadcast %cst_18 : f32 to vector<8x1xf32>
      %67 = arith.mulf %65, %66 : vector<8x1xf32>
      %68 = vector.broadcast %67 : vector<8x1xf32> to vector<8x128xf32>
      %69 = arith.subf %56, %68 : vector<8x128xf32>
      %cst_19 = arith.constant 0.000000e+00 : f32
      %70 = vector.shape_cast %59 : vector<1x128xi1> to vector<1x128xi1>
      %71 = vector.broadcast %70 : vector<1x128xi1> to vector<8x128xi1>
      %72 = vector.broadcast %cst_19 : f32 to vector<8x128xf32>
      %73 = arith.select %71, %69, %72 : vector<8x128xi1>, vector<8x128xf32>
      %74 = arith.mulf %73, %73 : vector<8x128xf32>
      %cst_20 = arith.constant dense<0.000000e+00> : vector<8xf32>
      %75 = vector.multi_reduction <add>, %74, %cst_20 [1] : vector<8x128xf32> to vector<8xf32>
      %76 = vector.shape_cast %75 : vector<8xf32> to vector<8x1xf32>
      %cst_21 = arith.constant 3.125000e-02 : f32
      %77 = vector.broadcast %cst_21 : f32 to vector<8x1xf32>
      %78 = arith.mulf %76, %77 : vector<8x1xf32>
      %cst_22 = arith.constant 9.99999997E-7 : f32
      %79 = vector.broadcast %cst_22 : f32 to vector<8x1xf32>
      %80 = arith.addf %78, %79 : vector<8x1xf32>
      %81 = math.rsqrt %80 : vector<8x1xf32>
      %82 = vector.broadcast %81 : vector<8x1xf32> to vector<8x128xf32>
      %83 = arith.mulf %73, %82 : vector<8x128xf32>
      %84 = vector.extract_strided_slice %43 {offsets = [3, 0], sizes = [1, 128], strides = [1, 1]} : vector<8x128xf32> to vector<1x128xf32>
      %85 = vector.broadcast %84 : vector<1x128xf32> to vector<8x128xf32>
      %86 = arith.mulf %83, %85 : vector<8x128xf32>
      %87 = vector.extract_strided_slice %43 {offsets = [4, 0], sizes = [1, 128], strides = [1, 1]} : vector<8x128xf32> to vector<1x128xf32>
      %88 = vector.broadcast %87 : vector<1x128xf32> to vector<8x128xf32>
      %89 = arith.addf %86, %88 : vector<8x128xf32>
      %90 = arith.truncf %89 : vector<8x128xf32> to vector<8x128xbf16>
      %c0_23 = arith.constant 0 : index
      %c0_24 = arith.constant 0 : index
      %91 = vector.load %arg8[%c0_23, %c0_24] : memref<128x128xbf16, #tpu.memory_space<vmem>>, vector<128x128xbf16>
      %cst_25 = arith.constant dense<0.000000e+00> : vector<8x128xf32>
      %92 = tpu.matmul %90, %91, %cst_25 {dimension_numbers = #tpu.dot_dimension_numbers<[1], [0], [0], [1], [0, 0, 1, 1], [], []>} : vector<8x128xbf16>, vector<128x128xbf16>, vector<8x128xf32> -> vector<8x128xf32>
      %93 = vector.extract_strided_slice %43 {offsets = [5, 0], sizes = [1, 128], strides = [1, 1]} : vector<8x128xf32> to vector<1x128xf32>
      %94 = vector.broadcast %93 : vector<1x128xf32> to vector<8x128xf32>
      %95 = arith.addf %92, %94 : vector<8x128xf32>
      %cst_26 = arith.constant 0.000000e+00 : f32
      %96 = vector.broadcast %cst_26 : f32 to vector<8x128xf32>
      %97 = arith.maximumf %95, %96 : vector<8x128xf32>
      %98 = arith.truncf %97 : vector<8x128xf32> to vector<8x128xbf16>
      %c0_27 = arith.constant 0 : index
      %c0_28 = arith.constant 0 : index
      %99 = vector.load %arg9[%c0_27, %c0_28] : memref<128x128xbf16, #tpu.memory_space<vmem>>, vector<128x128xbf16>
      %cst_29 = arith.constant dense<0.000000e+00> : vector<8x128xf32>
      %100 = tpu.matmul %98, %99, %cst_29 {dimension_numbers = #tpu.dot_dimension_numbers<[1], [0], [0], [1], [0, 0, 1, 1], [], []>} : vector<8x128xbf16>, vector<128x128xbf16>, vector<8x128xf32> -> vector<8x128xf32>
      %101 = vector.extract_strided_slice %43 {offsets = [6, 0], sizes = [1, 128], strides = [1, 1]} : vector<8x128xf32> to vector<1x128xf32>
      %102 = vector.broadcast %101 : vector<1x128xf32> to vector<8x128xf32>
      %103 = arith.addf %100, %102 : vector<8x128xf32>
      %104 = arith.addf %103, %56 : vector<8x128xf32>
      %c0_30 = arith.constant 0 : index
      %c0_31 = arith.constant 0 : index
      %105 = vector.load %arg11[%c0_30, %c0_31] : memref<8x128xf32, #tpu.memory_space<vmem>>, vector<8x128xf32>
      tpu.vector_store %arg11[%c0_30, %c0_31], %104 {strides = array<i32>} : memref<8x128xf32, #tpu.memory_space<vmem>>, vector<8x128xf32>,
    } else {
    }
    return
  }
  func.func @transform_0(%arg0: i32, %arg1: i32, %arg2: memref<16xi32, #tpu.memory_space<smem>>) -> (i32, i32) {
    %c0_i32 = arith.constant 0 : i32
    %c0_i32_0 = arith.constant 0 : i32
    return %arg0, %c0_i32 : i32, i32
  }
  func.func @transform_1(%arg0: i32, %arg1: i32, %arg2: memref<16xi32, #tpu.memory_space<smem>>) -> (i32, i32, i32) {
    %c0_i32 = arith.constant 0 : i32
    %c0_i32_0 = arith.constant 0 : i32
    return %arg1, %arg0, %c0_i32 : i32, i32, i32
  }
  func.func @transform_2(%arg0: i32, %arg1: i32, %arg2: memref<16xi32, #tpu.memory_space<smem>>) -> (i32, i32) {
    %c0_i32 = arith.constant 0 : i32
    %c0_i32_0 = arith.constant 0 : i32
    %c0_i32_1 = arith.constant 0 : i32
    return %c0_i32, %c0_i32_0 : i32, i32
  }
  func.func @transform_3(%arg0: i32, %arg1: i32, %arg2: memref<16xi32, #tpu.memory_space<smem>>) -> (i32, i32) {
    %c0_i32 = arith.constant 0 : i32
    %c0_i32_0 = arith.constant 0 : i32
    %c0_i32_1 = arith.constant 0 : i32
    return %c0_i32, %c0_i32_0 : i32, i32
  }
  func.func @transform_4(%arg0: i32, %arg1: i32, %arg2: memref<16xi32, #tpu.memory_space<smem>>) -> (i32, i32) {
    %c0_i32 = arith.constant 0 : i32
    %c0_i32_0 = arith.constant 0 : i32
    %c0_i32_1 = arith.constant 0 : i32
    return %c0_i32, %c0_i32_0 : i32, i32
  }
  func.func @transform_5(%arg0: i32, %arg1: i32, %arg2: memref<16xi32, #tpu.memory_space<smem>>) -> (i32, i32) {
    %c0_i32 = arith.constant 0 : i32
    %c0_i32_0 = arith.constant 0 : i32
    %c0_i32_1 = arith.constant 0 : i32
    return %c0_i32, %c0_i32_0 : i32, i32
  }
  func.func @transform_6(%arg0: i32, %arg1: i32, %arg2: memref<16xi32, #tpu.memory_space<smem>>) -> (i32, i32) {
    %c0_i32 = arith.constant 0 : i32
    %c0_i32_0 = arith.constant 0 : i32
    %c0_i32_1 = arith.constant 0 : i32
    return %c0_i32, %c0_i32_0 : i32, i32
  }
  func.func @transform_7(%arg0: i32, %arg1: i32, %arg2: memref<16xi32, #tpu.memory_space<smem>>) -> (i32, i32) {
    %c0_i32 = arith.constant 0 : i32
    %c0_i32_0 = arith.constant 0 : i32
    %c0_i32_1 = arith.constant 0 : i32
    return %c0_i32, %c0_i32_0 : i32, i32
  }
  func.func @transform_8(%arg0: i32, %arg1: i32, %arg2: memref<16xi32, #tpu.memory_space<smem>>) -> (i32, i32) {
    %c0_i32 = arith.constant 0 : i32
    %c0_i32_0 = arith.constant 0 : i32
    return %arg0, %c0_i32 : i32, i32
  }
}

</mosaic_0001>

<llo_original>
// kernel: tpu_custom_call.1
$region0: #{tpu_custom_call.1}
  #allocation0 [shape = 'u32[]', space=smem, size = 0x4, offset = 0x4, fixed_abs, tag = 'smem constant byte address 0x4 - core index']
  #allocation1 [shape = 'u32[144,128]{1,0:T(1,128)}', space=vmem, size = 0x12000, scoped, tag = 'internal scratch']
  #allocation2 [shape = 'f32[8,128]{1,0:T(8,128)}', space=vmem, size = 0x1000, scoped, tag = 'scratch operand']
  #allocation3 [shape = 'f32[8,128]{1,0:T(8,128)}', space=vmem, size = 0x1000, scoped, tag = 'scratch operand']
  #allocation4 [shape = 'f32[8,128]{1,0:T(8,128)}', space=vmem, size = 0x1000, scoped, tag = 'scratch operand']
  #allocation5 [shape = 's32[1]{0}', space=sflag, size = 0x4, scoped, tag = 'scoped memory for tpu_custom_call.1']
  #allocation6 [shape = 'u8[512]{0}', space=smem, size = 0x200, scoped, tag = 'prefetched SMEM operand 0']
  %s0 = inlined_call_operand.hbm [shape: s32[16], index: 0, kind: input, shape index: {}]
  %s1 = inlined_call_operand.hbm [shape: s32[16,128], index: 1, kind: input, shape index: {}]
  %s2 = inlined_call_operand.hbm [shape: bf16[1,128,128], index: 2, kind: input, shape index: {}]
  %s3 = inlined_call_operand.hbm [shape: bf16[128,256], index: 3, kind: input, shape index: {}]
  %s4 = inlined_call_operand.hbm [shape: bf16[128,128], index: 4, kind: input, shape index: {}]
  %s5 = inlined_call_operand.hbm [shape: bf16[128,128], index: 5, kind: input, shape index: {}]
  %s6 = inlined_call_operand.hbm [shape: bf16[128,128], index: 6, kind: input, shape index: {}]
  %s7 = inlined_call_operand.hbm [shape: bf16[128,128], index: 7, kind: input, shape index: {}]
  %s8 = inlined_call_operand.vmem [shape: f32[8,128], index: 8, kind: input, shape index: {}]
  %s9 = inlined_call_operand.hbm [shape: f32[16,128], index: 9, kind: output, shape index: {}]
  %s10 = sld [smem:[#allocation0]]
  $region105: #{tpu_custom_call.1} parent=0
    _
  %s12 = ssub.s32 1, %s10
  %s13 = scalar_select 0, %s12, %s10
  %15 = dma.hbm_to_smem %s0, 16, [#allocation6], [#allocation5]
  %16 = dma.done [#allocation5], 16
  %17 = sfence
  $region1: #{tpu_custom_call.1} parent=0
    #allocation7 [shape = 'u8[8192]{0}', space=vmem, size = 0x2000, scoped, tag = 'input window, operand 1']
    #allocation8 [shape = 's32[2]{0}', space=sflag, size = 0x8, scoped, tag = 'scoped memory for tpu_custom_call.1']
    #allocation9 [shape = 's32[2]{0}', space=sflag, size = 0x8, scoped, tag = 'scoped memory for tpu_custom_call.1']
    #allocation10 [shape = 'u8[32768]{0}', space=vmem, size = 0x8000, scoped, tag = 'input window, operand 2']
    #allocation11 [shape = 's32[2]{0}', space=sflag, size = 0x8, scoped, tag = 'scoped memory for tpu_custom_call.1']
    #allocation12 [shape = 'u8[65536]{0}', space=vmem, size = 0x10000, scoped, tag = 'input window, operand 3, single buffered']
    #allocation13 [shape = 'u8[32768]{0}', space=vmem, size = 0x8000, scoped, tag = 'input window, operand 4, single buffered']
    #allocation14 [shape = 's32[1]{0}', space=sflag, size = 0x4, scoped, tag = 'scoped memory for tpu_custom_call.1']
    #allocation15 [shape = 'u8[32768]{0}', space=vmem, size = 0x8000, scoped, tag = 'input window, operand 5, single buffered']
    #allocation16 [shape = 'u8[32768]{0}', space=vmem, size = 0x8000, scoped, tag = 'input window, operand 6, single buffered']
    #allocation17 [shape = 's32[1]{0}', space=sflag, size = 0x4, scoped, tag = 'scoped memory for tpu_custom_call.1']
    #allocation18 [shape = 'u8[32768]{0}', space=vmem, size = 0x8000, scoped, tag = 'input window, operand 7, single buffered']
    #allocation19 [shape = 'u8[8192]{0}', space=vmem, size = 0x2000, scoped, tag = 'output window, operand 0']
    %18 = vsyncpa [#allocation8], 0
    %s19 = scalar_lea.sflag [#allocation8], 1
    %20 = vsyncpa %s19, 0
    %21 = vsyncpa [#allocation11], 0
    %s22 = scalar_lea.sflag [#allocation11], 1
    %23 = vsyncpa %s22, 0
    %24 = vsyncpa [#allocation14], 0
    %25 = vsyncpa [#allocation17], 0
    %26 = vsyncpa [#allocation9], 0
    %s27 = scalar_lea.sflag [#allocation9], 1
    %28 = vsyncpa %s27, 0
    loop: start=0, step=1, limit=4
    $region2: #{tpu_custom_call.1} parent=1 // loop_pre_header
      _
    $region3: #{tpu_custom_call.1} parent=1 // loop_header
      %s30 = sphi 0, %s34
      %p31 = scmp.ge.s32.totalorder %s30, 4
      %s37 = sphi 0, %s49
      %s38 = sphi 0, %s45
      %s39 = sphi 0, %s37
      %s40 = sphi 0, %s38
      %s41 = sphi 0, %s39
      %s42 = sphi 0, %s40
      %s52 = sphi 0, %s54
      %s55 = sphi 0, %s52
      %s56 = sphi 0, %s55
      %s72 = sphi 0, %s56
      %s80 = sphi 0, %s82
      %s83 = sphi 0, %s80
      %s84 = sphi 0, %s83
      %s100 = sphi 0, %s84
      %s104 = sphi 0, %s104
      %s106 = sphi 0, %s104
      %s107 = sphi 0, %s106
      %s121 = sphi 0, %s107
      %s125 = sphi 0, %s125
      %s127 = sphi 0, %s125
      %s128 = sphi 0, %s127
      %s142 = sphi 0, %s128
      %s146 = sphi 0, %s146
      %s148 = sphi 0, %s146
      %s149 = sphi 0, %s148
      %s163 = sphi 0, %s149
      %s167 = sphi 0, %s167
      %s169 = sphi 0, %s167
      %s170 = sphi 0, %s169
      %s184 = sphi 0, %s170
      %s188 = sphi 0, %s188
      %s190 = sphi 0, %s188
      %s191 = sphi 0, %s190
      %s205 = sphi 0, %s191
      %s209 = sphi 0, %s209
      %s211 = sphi 0, %s209
      %s212 = sphi 0, %s211
      %s226 = sphi 0, %s212
      %s232 = sphi 0, %s234
      %s235 = sphi 0, %s232
      %s236 = sphi 0, %s235
      %s252 = sphi 0, %s236
    $region4: #{tpu_custom_call.1} parent=1 // loop_header_branch
      %33 = sbr.rel (%p31) target = $region8
    $region5: #{tpu_custom_call.1} parent=1 // loop_body
      %s35 = ssub.s32 %s30, 1
      %s36 = ssub.s32 %s30, 2
      %s43 = sadd.s32 1, %s38
      %p44 = scmp.ge.s32.totalorder %s43, 1
      %s45 = scalar_select %p44, 0, %s43
      %s46 = sadd.s32 1, %s37
      %s47 = scalar_select %p44, %s46, %s37
      %p48 = scmp.ge.s32.totalorder %s47, 2
      %s49 = scalar_select %p48, 0, %s47
      %s50 = ssub.s32 %s37, %s49
      %p51 = scmp.eq.s32.totalorder %s50, 0
      %s53 = sadd.s32 %s52, 1
      %s54 = scalar_select %p51, %s52, %s53
      %p57 = pneg %p51
      %p58 = scmp.eq.s32.totalorder %s30, 1
      %p59 = por %p57, %p58
      %p60 = scmp.ne.s32.totalorder %s52, %s55
      %p61 = scmp.eq.s32.totalorder %s30, 0
      %p62 = por %p60, %p61
      %p63 = scmp.ne.s32.totalorder %s52, %s55
      %p64 = scmp.eq.s32.totalorder %s35, 1
      %p65 = por %p63, %p64
      %p66 = scmp.ne.s32.totalorder %s55, %s56
      %p67 = scmp.eq.s32.totalorder %s35, 0
      %p68 = por %p66, %p67
      %p69 = scmp.ne.s32.totalorder %s55, %s56
      %p70 = scmp.eq.s32.totalorder %s36, 1
      %p71 = por %p69, %p70
      %p73 = scmp.ne.s32.totalorder %s56, %s72
      %p74 = scmp.eq.s32.totalorder %s36, 0
      %p75 = por %p73, %p74
      %s76 = ssub.s32 %s38, %s45
      %s77 = ssub.s32 %s37, %s49
      %s78 = sor.u32 %s76, %s77
      %p79 = scmp.eq.s32.totalorder %s78, 0
      %s81 = sadd.s32 %s80, 1
      %s82 = scalar_select %p79, %s80, %s81
      %p85 = pneg %p79
      %p86 = scmp.eq.s32.totalorder %s30, 1
      %p87 = por %p85, %p86
      %p88 = scmp.ne.s32.totalorder %s80, %s83
      %p89 = scmp.eq.s32.totalorder %s30, 0
      %p90 = por %p88, %p89
      %p91 = scmp.ne.s32.totalorder %s80, %s83
      %p92 = scmp.eq.s32.totalorder %s35, 1
      %p93 = por %p91, %p92
      %p94 = scmp.ne.s32.totalorder %s83, %s84
      %p95 = scmp.eq.s32.totalorder %s35, 0
      %p96 = por %p94, %p95
      %p97 = scmp.ne.s32.totalorder %s83, %s84
      %p98 = scmp.eq.s32.totalorder %s36, 1
      %p99 = por %p97, %p98
      %p101 = scmp.ne.s32.totalorder %s84, %s100
      %p102 = scmp.eq.s32.totalorder %s36, 0
      %p103 = por %p101, %p102
      %s105 = sadd.s32 %s104, 1
      %p108 = scmp.eq.s32.totalorder %s30, 1
      %p109 = scmp.ne.s32.totalorder %s104, %s106
      %p110 = scmp.eq.s32.totalorder %s30, 0
      %p111 = por %p109, %p110
      %p112 = scmp.ne.s32.totalorder %s104, %s106
      %p113 = scmp.eq.s32.totalorder %s35, 1
      %p114 = por %p112, %p113
      %p115 = scmp.ne.s32.totalorder %s106, %s107
      %p116 = scmp.eq.s32.totalorder %s35, 0
      %p117 = por %p115, %p116
      %p118 = scmp.ne.s32.totalorder %s106, %s107
      %p119 = scmp.eq.s32.totalorder %s36, 1
      %p120 = por %p118, %p119
      %p122 = scmp.ne.s32.totalorder %s107, %s121
      %p123 = scmp.eq.s32.totalorder %s36, 0
      %p124 = por %p122, %p123
      %s126 = sadd.s32 %s125, 1
      %p129 = scmp.eq.s32.totalorder %s30, 1
      %p130 = scmp.ne.s32.totalorder %s125, %s127
      %p131 = scmp.eq.s32.totalorder %s30, 0
      %p132 = por %p130, %p131
      %p133 = scmp.ne.s32.totalorder %s125, %s127
      %p134 = scmp.eq.s32.totalorder %s35, 1
      %p135 = por %p133, %p134
      %p136 = scmp.ne.s32.totalorder %s127, %s128
      %p137 = scmp.eq.s32.totalorder %s35, 0
      %p138 = por %p136, %p137
      %p139 = scmp.ne.s32.totalorder %s127, %s128
      %p140 = scmp.eq.s32.totalorder %s36, 1
      %p141 = por %p139, %p140
      %p143 = scmp.ne.s32.totalorder %s128, %s142
      %p144 = scmp.eq.s32.totalorder %s36, 0
      %p145 = por %p143, %p144
      %s147 = sadd.s32 %s146, 1
      %p150 = scmp.eq.s32.totalorder %s30, 1
      %p151 = scmp.ne.s32.totalorder %s146, %s148
      %p152 = scmp.eq.s32.totalorder %s30, 0
      %p153 = por %p151, %p152
      %p154 = scmp.ne.s32.totalorder %s146, %s148
      %p155 = scmp.eq.s32.totalorder %s35, 1
      %p156 = por %p154, %p155
      %p157 = scmp.ne.s32.totalorder %s148, %s149
      %p158 = scmp.eq.s32.totalorder %s35, 0
      %p159 = por %p157, %p158
      %p160 = scmp.ne.s32.totalorder %s148, %s149
      %p161 = scmp.eq.s32.totalorder %s36, 1
      %p162 = por %p160, %p161
      %p164 = scmp.ne.s32.totalorder %s149, %s163
      %p165 = scmp.eq.s32.totalorder %s36, 0
      %p166 = por %p164, %p165
      %s168 = sadd.s32 %s167, 1
      %p171 = scmp.eq.s32.totalorder %s30, 1
      %p172 = scmp.ne.s32.totalorder %s167, %s169
      %p173 = scmp.eq.s32.totalorder %s30, 0
      %p174 = por %p172, %p173
      %p175 = scmp.ne.s32.totalorder %s167, %s169
      %p176 = scmp.eq.s32.totalorder %s35, 1
      %p177 = por %p175, %p176
      %p178 = scmp.ne.s32.totalorder %s169, %s170
      %p179 = scmp.eq.s32.totalorder %s35, 0
      %p180 = por %p178, %p179
      %p181 = scmp.ne.s32.totalorder %s169, %s170
      %p182 = scmp.eq.s32.totalorder %s36, 1
      %p183 = por %p181, %p182
      %p185 = scmp.ne.s32.totalorder %s170, %s184
      %p186 = scmp.eq.s32.totalorder %s36, 0
      %p187 = por %p185, %p186
      %s189 = sadd.s32 %s188, 1
      %p192 = scmp.eq.s32.totalorder %s30, 1
      %p193 = scmp.ne.s32.totalorder %s188, %s190
      %p194 = scmp.eq.s32.totalorder %s30, 0
      %p195 = por %p193, %p194
      %p196 = scmp.ne.s32.totalorder %s188, %s190
      %p197 = scmp.eq.s32.totalorder %s35, 1
      %p198 = por %p196, %p197
      %p199 = scmp.ne.s32.totalorder %s190, %s191
      %p200 = scmp.eq.s32.totalorder %s35, 0
      %p201 = por %p199, %p200
      %p202 = scmp.ne.s32.totalorder %s190, %s191
      %p203 = scmp.eq.s32.totalorder %s36, 1
      %p204 = por %p202, %p203
      %p206 = scmp.ne.s32.totalorder %s191, %s205
      %p207 = scmp.eq.s32.totalorder %s36, 0
      %p208 = por %p206, %p207
      %s210 = sadd.s32 %s209, 1
      %p213 = scmp.eq.s32.totalorder %s30, 1
      %p214 = scmp.ne.s32.totalorder %s209, %s211
      %p215 = scmp.eq.s32.totalorder %s30, 0
      %p216 = por %p214, %p215
      %p217 = scmp.ne.s32.totalorder %s209, %s211
      %p218 = scmp.eq.s32.totalorder %s35, 1
      %p219 = por %p217, %p218
      %p220 = scmp.ne.s32.totalorder %s211, %s212
      %p221 = scmp.eq.s32.totalorder %s35, 0
      %p222 = por %p220, %p221
      %p223 = scmp.ne.s32.totalorder %s211, %s212
      %p224 = scmp.eq.s32.totalorder %s36, 1
      %p225 = por %p223, %p224
      %p227 = scmp.ne.s32.totalorder %s212, %s226
      %p228 = scmp.eq.s32.totalorder %s36, 0
      %p229 = por %p227, %p228
      %s230 = ssub.s32 %s37, %s49
      %p231 = scmp.eq.s32.totalorder %s230, 0
      %s233 = sadd.s32 %s232, 1
      %s234 = scalar_select %p231, %s232, %s233
      %p237 = pneg %p231
      %p238 = scmp.eq.s32.totalorder %s30, 1
      %p239 = por %p237, %p238
      %p240 = scmp.ne.s32.totalorder %s232, %s235
      %p241 = scmp.eq.s32.totalorder %s30, 0
      %p242 = por %p240, %p241
      %p243 = scmp.ne.s32.totalorder %s232, %s235
      %p244 = scmp.eq.s32.totalorder %s35, 1
      %p245 = por %p243, %p244
      %p246 = scmp.ne.s32.totalorder %s235, %s236
      %p247 = scmp.eq.s32.totalorder %s35, 0
      %p248 = por %p246, %p247
      %p249 = scmp.ne.s32.totalorder %s235, %s236
      %p250 = scmp.eq.s32.totalorder %s36, 1
      %p251 = por %p249, %p250
      %p253 = scmp.ne.s32.totalorder %s236, %s252
      %p254 = scmp.eq.s32.totalorder %s36, 0
      %p255 = por %p253, %p254
      %p256 = scmp.le.s32.totalorder 1, %s30
      %p257 = scmp.lt.s32.totalorder %s30, 3
      %p258 = pnand %p256, %p257
      %p259 = pneg %p258
      // Predicated region
      $region9: #{tpu_custom_call.1} parent=5 // pred_check
        _
      $region10: #{tpu_custom_call.1} parent=5 // pred_check_branch
        %261 = sbr.rel (%p258) target = $region12
      $region11: #{tpu_custom_call.1} parent=5 // pred_region
        %s262 = ssub.s32 %s30, 1
        // Predicated region
        $region13: #{tpu_custom_call.1} parent=11 // pred_check
          %p263 = pneg %p117
        $region14: #{tpu_custom_call.1} parent=11 // pred_check_branch
          %265 = sbr.rel (%p263) target = $region16
        $region15: #{tpu_custom_call.1} parent=11 // pred_region
          %s267 = ssub.s32 2048, 2048
          %268 = vsyncadd [#allocation11], %s267
          %s269 = sshll.u32 [#allocation12], 4
          %s270 = int_to_ptr.vmem [resolvable:$true] %s269
          %275 = dma.hbm_to_vmem [thread:$0]  %s3, 2048, %s270, [#allocation11], 128, 128, 8
        $region16: #{tpu_custom_call.1} parent=11 // pred_fallthru
          _
        // Predicated region
        $region17: #{tpu_custom_call.1} parent=11 // pred_check
          %p276 = pneg %p138
        $region18: #{tpu_custom_call.1} parent=11 // pred_check_branch
          %278 = sbr.rel (%p276) target = $region20
        $region19: #{tpu_custom_call.1} parent=11 // pred_region
          %s280 = ssub.s32 1024, 1024
          %281 = vsyncadd [#allocation14], %s280
          %s282 = sshll.u32 [#allocation13], 4
          %s283 = int_to_ptr.vmem [resolvable:$true] %s282
          %288 = dma.hbm_to_vmem [thread:$0]  %s4, 1024, %s283, [#allocation14], 64, 64, 4
        $region20: #{tpu_custom_call.1} parent=11 // pred_fallthru
          _
        // Predicated region
        $region21: #{tpu_custom_call.1} parent=11 // pred_check
          %p289 = pneg %p159
        $region22: #{tpu_custom_call.1} parent=11 // pred_check_branch
          %291 = sbr.rel (%p289) target = $region24
        $region23: #{tpu_custom_call.1} parent=11 // pred_region
          %s293 = ssub.s32 1024, 1024
          %294 = vsyncadd [#allocation14], %s293
          %s295 = sshll.u32 [#allocation15], 4
          %s296 = int_to_ptr.vmem [resolvable:$true] %s295
          %301 = dma.hbm_to_vmem [thread:$0]  %s5, 1024, %s296, [#allocation14], 64, 64, 4
        $region24: #{tpu_custom_call.1} parent=11 // pred_fallthru
          _
        // Predicated region
        $region25: #{tpu_custom_call.1} parent=11 // pred_check
          %p302 = pneg %p180
        $region26: #{tpu_custom_call.1} parent=11 // pred_check_branch
          %304 = sbr.rel (%p302) target = $region28
        $region27: #{tpu_custom_call.1} parent=11 // pred_region
          %s306 = ssub.s32 1024, 1024
          %307 = vsyncadd [#allocation17], %s306
          %s308 = sshll.u32 [#allocation16], 4
          %s309 = int_to_ptr.vmem [resolvable:$true] %s308
          %314 = dma.hbm_to_vmem [thread:$0]  %s6, 1024, %s309, [#allocation17], 64, 64, 4
        $region28: #{tpu_custom_call.1} parent=11 // pred_fallthru
          _
        // Predicated region
        $region29: #{tpu_custom_call.1} parent=11 // pred_check
          %p315 = pneg %p201
        $region30: #{tpu_custom_call.1} parent=11 // pred_check_branch
          %317 = sbr.rel (%p315) target = $region32
        $region31: #{tpu_custom_call.1} parent=11 // pred_region
          %s319 = ssub.s32 1024, 1024
          %320 = vsyncadd [#allocation17], %s319
          %s321 = sshll.u32 [#allocation18], 4
          %s322 = int_to_ptr.vmem [resolvable:$true] %s321
          %327 = dma.hbm_to_vmem [thread:$0]  %s7, 1024, %s322, [#allocation17], 64, 64, 4
        $region32: #{tpu_custom_call.1} parent=11 // pred_fallthru
          _
        // Predicated region
        $region33: #{tpu_custom_call.1} parent=11 // pred_check
          %p328 = pneg %p222
        $region34: #{tpu_custom_call.1} parent=11 // pred_check_branch
          %330 = sbr.rel (%p328) target = $region36
        $region35: #{tpu_custom_call.1} parent=11 // pred_region
          _
        $region36: #{tpu_custom_call.1} parent=11 // pred_fallthru
          _
      $region12: #{tpu_custom_call.1} parent=5 // pred_fallthru
        _
      %p331 = scmp.lt.s32.totalorder %s30, 2
      // Predicated region
      $region37: #{tpu_custom_call.1} parent=5 // pred_check
        %p332 = pneg %p331
      $region38: #{tpu_custom_call.1} parent=5 // pred_check_branch
        %334 = sbr.rel (%p332) target = $region40
      $region39: #{tpu_custom_call.1} parent=5 // pred_region
        // Predicated region
        $region41: #{tpu_custom_call.1} parent=39 // pred_check
          %p335 = pneg %p62
        $region42: #{tpu_custom_call.1} parent=39 // pred_check_branch
          %337 = sbr.rel (%p335) target = $region44
        $region43: #{tpu_custom_call.1} parent=39 // pred_region
          %s338 = sand.u32 %s52, 1
          %s339 = scalar_lea.sflag [#allocation8], %s338
          %s340 = sand.u32 %s52, 1
          %s341 = smul.addr %s340, 8
          %s342 = scalar_lea.vmem [#allocation7], %s341
          %s344 = ssub.s32 128, 128
          %345 = vsyncadd %s339, %s344
          %s346 = smul.addr %s37, 128
          %s347 = scalar_lea.hbm %s1, %s346
          %s349 = sshll.u32 %s342, 4
          %s350 = int_to_ptr.vmem [resolvable:$true] %s349
          %352 = dma.hbm_to_vmem [thread:$0]  %s347, 128, %s350, %s339
        $region44: #{tpu_custom_call.1} parent=39 // pred_fallthru
          _
        // Predicated region
        $region45: #{tpu_custom_call.1} parent=39 // pred_check
          %p353 = pneg %p90
        $region46: #{tpu_custom_call.1} parent=39 // pred_check_branch
          %355 = sbr.rel (%p353) target = $region48
        $region47: #{tpu_custom_call.1} parent=39 // pred_region
          %s356 = sand.u32 %s30, 1
          %s357 = scalar_lea.sflag [#allocation11], %s356
          %s358 = sand.u32 %s80, 1
          %s359 = smul.addr %s358, 32
          %s360 = scalar_lea.vmem [#allocation10], %s359
          %s361 = smul.u32 8, %s37
          %s363 = ssub.s32 512, 512
          %364 = vsyncadd %s357, %s363
          %s365 = smul.addr %s38, 16
          %s366 = sadd.s32 %s361, %s365
          %s367 = smul.addr %s366, 64
          %s368 = scalar_lea.hbm %s2, %s367
          %s369 = sshll.u32 %s360, 4
          %s370 = int_to_ptr.vmem [resolvable:$true] %s369
          %375 = dma.hbm_to_vmem [thread:$0]  %s368, 512, %s370, %s357, 64, 64, 4
        $region48: #{tpu_custom_call.1} parent=39 // pred_fallthru
          _
      $region40: #{tpu_custom_call.1} parent=5 // pred_fallthru
        _
      %p376 = scmp.le.s32.totalorder 1, %s30
      %p377 = scmp.lt.s32.totalorder %s30, 3
      %p378 = pnand %p376, %p377
      %p379 = pneg %p378
      // Predicated region
      $region49: #{tpu_custom_call.1} parent=5 // pred_check
        _
      $region50: #{tpu_custom_call.1} parent=5 // pred_check_branch
        %381 = sbr.rel (%p378) target = $region52
      $region51: #{tpu_custom_call.1} parent=5 // pred_region
        %s382 = ssub.s32 %s30, 1
        %s383 = sand.u32 %s55, 1
        %s384 = scalar_lea.sflag [#allocation8], %s383
        %s385 = sand.u32 %s55, 1
        %s386 = smul.addr %s385, 8
        %s387 = scalar_lea.vmem [#allocation7], %s386
        // Predicated region
        $region53: #{tpu_custom_call.1} parent=51 // pred_check
          %p388 = pneg %p68
        $region54: #{tpu_custom_call.1} parent=51 // pred_check_branch
          %390 = sbr.rel (%p388) target = $region56
        $region55: #{tpu_custom_call.1} parent=51 // pred_region
          %391 = dma.done %s384, 128
        $region56: #{tpu_custom_call.1} parent=51 // pred_fallthru
          _
        %s392 = sand.u32 %s35, 1
        %s393 = scalar_lea.sflag [#allocation11], %s392
        %s394 = sand.u32 %s83, 1
        %s395 = smul.addr %s394, 32
        %s396 = scalar_lea.vmem [#allocation10], %s395
        // Predicated region
        $region57: #{tpu_custom_call.1} parent=51 // pred_check
          %p397 = pneg %p96
        $region58: #{tpu_custom_call.1} parent=51 // pred_check_branch
          %399 = sbr.rel (%p397) target = $region60
        $region59: #{tpu_custom_call.1} parent=51 // pred_region
          %400 = dma.done %s393, 512
        $region60: #{tpu_custom_call.1} parent=51 // pred_fallthru
          _
        // Predicated region
        $region61: #{tpu_custom_call.1} parent=51 // pred_check
          %p401 = pneg %p117
        $region62: #{tpu_custom_call.1} parent=51 // pred_check_branch
          %403 = sbr.rel (%p401) target = $region64
        $region63: #{tpu_custom_call.1} parent=51 // pred_region
          %404 = dma.done [#allocation11], 2048
        $region64: #{tpu_custom_call.1} parent=51 // pred_fallthru
          _
        // Predicated region
        $region65: #{tpu_custom_call.1} parent=51 // pred_check
          %p405 = pneg %p138
        $region66: #{tpu_custom_call.1} parent=51 // pred_check_branch
          %407 = sbr.rel (%p405) target = $region68
        $region67: #{tpu_custom_call.1} parent=51 // pred_region
          %408 = dma.done [#allocation14], 1024
        $region68: #{tpu_custom_call.1} parent=51 // pred_fallthru
          _
        // Predicated region
        $region69: #{tpu_custom_call.1} parent=51 // pred_check
          %p409 = pneg %p159
        $region70: #{tpu_custom_call.1} parent=51 // pred_check_branch
          %411 = sbr.rel (%p409) target = $region72
        $region71: #{tpu_custom_call.1} parent=51 // pred_region
          %412 = dma.done [#allocation14], 1024
        $region72: #{tpu_custom_call.1} parent=51 // pred_fallthru
          _
        // Predicated region
        $region73: #{tpu_custom_call.1} parent=51 // pred_check
          %p413 = pneg %p180
        $region74: #{tpu_custom_call.1} parent=51 // pred_check_branch
          %415 = sbr.rel (%p413) target = $region76
        $region75: #{tpu_custom_call.1} parent=51 // pred_region
          %416 = dma.done [#allocation17], 1024
        $region76: #{tpu_custom_call.1} parent=51 // pred_fallthru
          _
        // Predicated region
        $region77: #{tpu_custom_call.1} parent=51 // pred_check
          %p417 = pneg %p201
        $region78: #{tpu_custom_call.1} parent=51 // pred_check_branch
          %419 = sbr.rel (%p417) target = $region80
        $region79: #{tpu_custom_call.1} parent=51 // pred_region
          %420 = dma.done [#allocation17], 1024
        $region80: #{tpu_custom_call.1} parent=51 // pred_fallthru
          _
        %s421 = sand.u32 %s55, 1
        %s422 = scalar_lea.sflag [#allocation8], %s421
        %s423 = sand.u32 %s55, 1
        %s424 = smul.addr %s423, 8
        %s425 = scalar_lea.vmem [#allocation7], %s424
        %p426 = pneg %p68
        %p427 = pneg %p65
        %s428 = sand.u32 %s35, 1
        %s429 = scalar_lea.sflag [#allocation11], %s428
        %s430 = sand.u32 %s83, 1
        %s431 = smul.addr %s430, 32
        %s432 = scalar_lea.vmem [#allocation10], %s431
        %p433 = pneg %p96
        %p434 = pneg %p93
        %p435 = pneg %p117
        %p436 = pneg %p114
        %p437 = pneg %p138
        %p438 = pneg %p135
        %p439 = pneg %p159
        %p440 = pneg %p156
        %p441 = pneg %p180
        %p442 = pneg %p177
        %p443 = pneg %p201
        %p444 = pneg %p198
        %p445 = pneg %p222
        %p446 = pneg %p219
        %p447 = pneg %p248
        %p448 = pneg %p245
        %s449 = sand.u32 %s235, 1
        %s450 = scalar_lea.sflag [#allocation9], %s449
        %s451 = sand.u32 %s235, 1
        %s452 = smul.addr %s451, 8
        %s453 = scalar_lea.vmem [#allocation19], %s452
        %s454 = smul.u32 8, %s39
        %p456 = scmp.eq.s32.totalorder %s40, 0
        // Predicated region
        $region81: #{tpu_custom_call.1} parent=51 // pred_check
          %p457 = pneg %p456
        $region82: #{tpu_custom_call.1} parent=51 // pred_check_branch
          %459 = sbr.rel (%p457) target = $region84
        $region83: #{tpu_custom_call.1} parent=51 // pred_region
          %460 = vst [vmem:[#allocation2] sm:$0xff] -1e+30
          %461 = vst [vmem:[#allocation3] sm:$0xff] 0.0
          %462 = vst [vmem:[#allocation4] sm:$0xff] 0.0
        $region84: #{tpu_custom_call.1} parent=51 // pred_fallthru
          _
        %s463 = smul.u32 %s39, 8
        %s464 = sld [smem:[#allocation6 + %s463]]
        %s465 = sadd.s32 %s463, 1
        %s466 = sld [smem:[#allocation6 + %s465]]
        %p467 = scmp.gt.s32.totalorder %s464, %s466
        %s468 = scalar_select %p467, %s464, %s466
        %s469 = sadd.s32 %s463, 2
        %s470 = sld [smem:[#allocation6 + %s469]]
        %p471 = scmp.gt.s32.totalorder %s468, %s470
        %s472 = scalar_select %p471, %s468, %s470
        %s473 = sadd.s32 %s463, 3
        %s474 = sld [smem:[#allocation6 + %s473]]
        %p475 = scmp.gt.s32.totalorder %s472, %s474
        %s476 = scalar_select %p475, %s472, %s474
        %s477 = sadd.s32 %s463, 4
        %s478 = sld [smem:[#allocation6 + %s477]]
        %p479 = scmp.gt.s32.totalorder %s476, %s478
        %s480 = scalar_select %p479, %s476, %s478
        %s481 = sadd.s32 %s463, 5
        %s482 = sld [smem:[#allocation6 + %s481]]
        %p483 = scmp.gt.s32.totalorder %s480, %s482
        %s484 = scalar_select %p483, %s480, %s482
        %s485 = sadd.s32 %s463, 6
        %s486 = sld [smem:[#allocation6 + %s485]]
        %p487 = scmp.gt.s32.totalorder %s484, %s486
        %s488 = scalar_select %p487, %s484, %s486
        %s489 = sadd.s32 %s463, 7
        %s490 = sld [smem:[#allocation6 + %s489]]
        %p491 = scmp.gt.s32.totalorder %s488, %s490
        %s492 = scalar_select %p491, %s488, %s490
        %s493 = smul.u32 %s40, 8
        %p494 = scmp.lt.s32.totalorder %s493, %s492
        %p495 = por %p456, %p494
        // Predicated region
        $region85: #{tpu_custom_call.1} parent=51 // pred_check
          %p496 = pneg %p495
        $region86: #{tpu_custom_call.1} parent=51 // pred_check_branch
          %498 = sbr.rel (%p496) target = $region88
        $region87: #{tpu_custom_call.1} parent=51 // pred_region
          %v499 = vld [vmem:[%s8] sm:$0xff]
          %v500 = vld [vmem:[%s396] sm:$0xf]
          %v501 = vld [vmem:[%s396 + $0x4] sm:$0xf]
          %v502 = vld [vmem:[%s396 + $0x8] sm:$0xf]
          %v503 = vld [vmem:[%s396 + $0xc] sm:$0xf]
          %v504 = vld [vmem:[%s396 + $0x10] sm:$0xf]
          %v505 = vld [vmem:[%s396 + $0x14] sm:$0xf]
          %v506 = vld [vmem:[%s396 + $0x18] sm:$0xf]
          %v507 = vld [vmem:[%s396 + $0x1c] sm:$0xf]
          %v508 = vld [vmem:[#allocation12] sm:$0xff]
          %v509 = vld [vmem:[#allocation12 + $0x8] sm:$0xff]
          %v510 = vld [vmem:[#allocation12 + $0x10] sm:$0xff]
          %v511 = vld [vmem:[#allocation12 + $0x18] sm:$0xff]
          %v512 = vld [vmem:[#allocation12 + $0x20] sm:$0xff]
          %v513 = vld [vmem:[#allocation12 + $0x28] sm:$0xff]
          %v514 = vld [vmem:[#allocation12 + $0x30] sm:$0xff]
          %v515 = vld [vmem:[#allocation12 + $0x38] sm:$0xff]
          %v516 = vld [vmem:[#allocation12 + $0x40] sm:$0xff]
          %v517 = vld [vmem:[#allocation12 + $0x48] sm:$0xff]
          %v518 = vld [vmem:[#allocation12 + $0x50] sm:$0xff]
          %v519 = vld [vmem:[#allocation12 + $0x58] sm:$0xff]
          %v520 = vld [vmem:[#allocation12 + $0x60] sm:$0xff]
          %v521 = vld [vmem:[#allocation12 + $0x68] sm:$0xff]
          %v522 = vld [vmem:[#allocation12 + $0x70] sm:$0xff]
          %v523 = vld [vmem:[#allocation12 + $0x78] sm:$0xff]
          %v532 = vunpack.c.l.b16 %v500
          %v533 = vunpack.c.l.b16 %v501
          %v534 = vunpack.c.l.b16 %v502
          %v535 = vunpack.c.l.b16 %v503
          %v536 = vunpack.c.l.b16 %v504
          %v537 = vunpack.c.l.b16 %v505
          %v538 = vunpack.c.l.b16 %v506
          %v539 = vunpack.c.l.b16 %v507
          %v540 = vpack.c.b16 %v533, %v532
          %v541 = vpack.c.b16 %v535, %v534
          %v542 = vpack.c.b16 %v537, %v536
          %v543 = vpack.c.b16 %v539, %v538
          %v564 = vunpack.c.l.b16 %v508
          %v565 = vunpack.c.h.b16 %v508
          %v566 = vunpack.c.l.b16 %v509
          %v567 = vunpack.c.h.b16 %v509
          %v568 = vunpack.c.l.b16 %v510
          %v569 = vunpack.c.h.b16 %v510
          %v570 = vunpack.c.l.b16 %v511
          %v571 = vunpack.c.h.b16 %v511
          %v572 = vunpack.c.l.b16 %v512
          %v573 = vunpack.c.h.b16 %v512
          %v574 = vunpack.c.l.b16 %v513
          %v575 = vunpack.c.h.b16 %v513
          %v576 = vunpack.c.l.b16 %v514
          %v577 = vunpack.c.h.b16 %v514
          %v578 = vunpack.c.l.b16 %v515
          %v579 = vunpack.c.h.b16 %v515
          %v580 = vunpack.c.l.b16 %v516
          %v581 = vunpack.c.h.b16 %v516
          %v582 = vunpack.c.l.b16 %v517
          %v583 = vunpack.c.h.b16 %v517
          %v584 = vunpack.c.l.b16 %v518
          %v585 = vunpack.c.h.b16 %v518
          %v586 = vunpack.c.l.b16 %v519
          %v587 = vunpack.c.h.b16 %v519
          %v588 = vunpack.c.l.b16 %v520
          %v589 = vunpack.c.h.b16 %v520
          %v590 = vunpack.c.l.b16 %v521
          %v591 = vunpack.c.h.b16 %v521
          %v592 = vunpack.c.l.b16 %v522
          %v593 = vunpack.c.h.b16 %v522
          %v594 = vunpack.c.l.b16 %v523
          %v595 = vunpack.c.h.b16 %v523
          %v596 = vpack.c.b16 %v566, %v564
          %v597 = vpack.c.b16 %v567, %v565
          %v598 = vpack.c.b16 %v570, %v568
          %v599 = vpack.c.b16 %v571, %v569
          %v600 = vpack.c.b16 %v574, %v572
          %v601 = vpack.c.b16 %v575, %v573
          %v602 = vpack.c.b16 %v578, %v576
          %v603 = vpack.c.b16 %v579, %v577
          %v604 = vpack.c.b16 %v582, %v580
          %v605 = vpack.c.b16 %v583, %v581
          %v606 = vpack.c.b16 %v586, %v584
          %v607 = vpack.c.b16 %v587, %v585
          %v608 = vpack.c.b16 %v590, %v588
          %v609 = vpack.c.b16 %v591, %v589
          %v610 = vpack.c.b16 %v594, %v592
          %v611 = vpack.c.b16 %v595, %v593
          %628 = vmatprep.subr.bf16.mxu0 %v597
          %629 = vmatpush1.bf16.msra.mxu0 %v596
          %630 = vmatprep.subr.bf16.mxu0 %v599
          %631 = vmatpush1.bf16.msra.mxu0 %v598
          %632 = vmatprep.subr.bf16.mxu0 %v601
          %633 = vmatpush1.bf16.msra.mxu0 %v600
          %634 = vmatprep.subr.bf16.mxu0 %v603
          %635 = vmatpush1.bf16.msra.mxu0 %v602
          %636 = vmatprep.subr.bf16.mxu0 %v605
          %637 = vmatpush1.bf16.msra.mxu0 %v604
          %638 = vmatprep.subr.bf16.mxu0 %v607
          %639 = vmatpush1.bf16.msra.mxu0 %v606
          %640 = vmatprep.subr.bf16.mxu0 %v609
          %641 = vmatpush1.bf16.msra.mxu0 %v608
          %642 = vmatprep.subr.bf16.mxu0 %v611
          %643 = vmatpush1.bf16.msra.mxu0 %v610
          %644 = vmatprep.subr.bf16.mxu0 0
          %645 = vmatpush1.bf16.msra.mxu0 0
          %646 = vmatprep.subr.bf16.mxu0 0
          %647 = vmatpush1.bf16.msra.mxu0 0
          %648 = vmatprep.subr.bf16.mxu0 0
          %649 = vmatpush1.bf16.msra.mxu0 0
          %650 = vmatprep.subr.bf16.mxu0 0
          %651 = vmatpush1.bf16.msra.mxu0 0
          %652 = vmatprep.subr.bf16.mxu0 0
          %653 = vmatpush1.bf16.msra.mxu0 0
          %654 = vmatprep.subr.bf16.mxu0 0
          %655 = vmatpush1.bf16.msra.mxu0 0
          %656 = vmatprep.subr.bf16.mxu0 0
          %657 = vmatpush1.bf16.msra.mxu0 0
          %658 = vmatprep.subr.bf16.mxu0 0
          %659 = vmatpush1.bf16.msra.mxu0 0
          %660 = vmatprep.mubr.bf16.mxu0 0
          %661 = vmatmul.mubr.bf16.gmra.mrb[0].mxu0 %v540
          %v662 = vpop.f32.mrb[0].mxu0
          %v663 = vadd.f32 0.0, %v662
          %v664 = vpop.f32.mrb[0].mxu0
          %v665 = vadd.f32 0.0, %v664
          %v666 = vpop.f32.mrb[0].mxu0
          %v667 = vadd.f32 0.0, %v666
          %v668 = vpop.f32.mrb[0].mxu0
          %v669 = vadd.f32 0.0, %v668
          %670 = vmatprep.mubr.bf16.mxu0 0
          %671 = vmatmul.mubr.bf16.gmra.mrb[0].mxu0 %v541
          %v672 = vpop.f32.mrb[0].mxu0
          %v673 = vadd.f32 0.0, %v672
          %v674 = vpop.f32.mrb[0].mxu0
          %v675 = vadd.f32 0.0, %v674
          %v676 = vpop.f32.mrb[0].mxu0
          %v677 = vadd.f32 0.0, %v676
          %v678 = vpop.f32.mrb[0].mxu0
          %v679 = vadd.f32 0.0, %v678
          %680 = vmatprep.mubr.bf16.mxu0 0
          %681 = vmatmul.mubr.bf16.gmra.mrb[0].mxu0 %v542
          %v682 = vpop.f32.mrb[0].mxu0
          %v683 = vadd.f32 0.0, %v682
          %v684 = vpop.f32.mrb[0].mxu0
          %v685 = vadd.f32 0.0, %v684
          %v686 = vpop.f32.mrb[0].mxu0
          %v687 = vadd.f32 0.0, %v686
          %v688 = vpop.f32.mrb[0].mxu0
          %v689 = vadd.f32 0.0, %v688
          %690 = vmatprep.mubr.bf16.mxu0 0
          %691 = vmatmul.mubr.bf16.gmra.mrb[0].mxu0 %v543
          %v692 = vpop.f32.mrb[0].mxu0
          %v693 = vadd.f32 0.0, %v692
          %v694 = vpop.f32.mrb[0].mxu0
          %v695 = vadd.f32 0.0, %v694
          %v696 = vpop.f32.mrb[0].mxu0
          %v697 = vadd.f32 0.0, %v696
          %v698 = vpop.f32.mrb[0].mxu0
          %v699 = vadd.f32 0.0, %v698
          %700 = vdwg.mxu0
          %v701 = vlaneseq
          %v702 = vshrl.u32 %v701, 7
          %v703 = vsub.s32 0, %v702
          %v704 = vrot.slane %v499, %v703
          %v705 = vadd.f32 %v663, %v704
          %v706 = vadd.f32 %v667, %v704
          %v707 = vadd.f32 %v673, %v704
          %v708 = vadd.f32 %v677, %v704
          %v709 = vadd.f32 %v683, %v704
          %v710 = vadd.f32 %v687, %v704
          %v711 = vadd.f32 %v693, %v704
          %v712 = vadd.f32 %v697, %v704
          %v713 = vlaneseq
          %v714 = vshrl.u32 %v713, 7
          %v715 = vsub.s32 1, %v714
          %v716 = vrot.slane %v499, %v715
          %v717 = vadd.f32 %v665, %v716
          %v718 = vadd.f32 %v669, %v716
          %v719 = vadd.f32 %v675, %v716
          %v720 = vadd.f32 %v679, %v716
          %v721 = vadd.f32 %v685, %v716
          %v722 = vadd.f32 %v689, %v716
          %v723 = vadd.f32 %v695, %v716
          %v724 = vadd.f32 %v699, %v716
          %v725 = vlaneseq
          %v726 = vshrl.u32 %v725, 7
          %v727 = vstv %s493
          %v728 = vadd.s32 %v727, %v726
          %v729 = vld [vmem:[%s387] sm:$0xff]
          %v730 = vcombine.high %v729, %v729
          %v732 = vunpack.c.l.s4 1966171168
          %v733 = vunpack.c.0.s8 %v732
          %v734 = vlaneseq
          %v735 = vshrl.u32 %v734, 7
          %v736 = vsub.s32 %v733, %v735
          %v737 = vrot.slane %v729, %v736
          %v739 = vunpack.c.l.s4 1966171168
          %v740 = vunpack.c.0.s8 %v739
          %v741 = vlaneseq
          %v742 = vshrl.u32 %v741, 7
          %v743 = vsub.s32 %v740, %v742
          %v744 = vrot.slane %v730, %v743
          %v745 = vcombine.high %v737, %v737
          %v746 = vcombine.high %v744, %v744
          %v748 = vunpack.c.l.s4 1966171168
          %v749 = vunpack.c.0.s8 %v748
          %v750 = vlaneseq
          %v751 = vshrl.u32 %v750, 7
          %v752 = vsub.s32 %v749, %v751
          %v753 = vrot.slane %v737, %v752
          %v755 = vunpack.c.l.s4 1966171168
          %v756 = vunpack.c.0.s8 %v755
          %v757 = vlaneseq
          %v758 = vshrl.u32 %v757, 7
          %v759 = vsub.s32 %v756, %v758
          %v760 = vrot.slane %v744, %v759
          %v762 = vunpack.c.l.s4 1966171168
          %v763 = vunpack.c.0.s8 %v762
          %v764 = vlaneseq
          %v765 = vshrl.u32 %v764, 7
          %v766 = vsub.s32 %v763, %v765
          %v767 = vrot.slane %v745, %v766
          %v769 = vunpack.c.l.s4 1966171168
          %v770 = vunpack.c.0.s8 %v769
          %v771 = vlaneseq
          %v772 = vshrl.u32 %v771, 7
          %v773 = vsub.s32 %v770, %v772
          %v774 = vrot.slane %v746, %v773
          %v775 = vcombine.high %v753, %v753
          %v776 = vcombine.high %v760, %v760
          %v777 = vcombine.high %v767, %v767
          %v778 = vcombine.high %v774, %v774
          %v779 = vlaneseq
          %v780 = vshrl.u32 %v779, 7
          %v781 = vsub.s32 0, %v780
          %v782 = vrot.slane %v753, %v781
          %v783 = vlaneseq
          %v784 = vshrl.u32 %v783, 7
          %v785 = vsub.s32 0, %v784
          %v786 = vrot.slane %v767, %v785
          %v787 = vlaneseq
          %v788 = vshrl.u32 %v787, 7
          %v789 = vsub.s32 0, %v788
          %v790 = vrot.slane %v775, %v789
          %v791 = vlaneseq
          %v792 = vshrl.u32 %v791, 7
          %v793 = vsub.s32 0, %v792
          %v794 = vrot.slane %v777, %v793
          %v795 = vlaneseq
          %v796 = vshrl.u32 %v795, 7
          %v797 = vsub.s32 0, %v796
          %v798 = vrot.slane %v760, %v797
          %v799 = vlaneseq
          %v800 = vshrl.u32 %v799, 7
          %v801 = vsub.s32 0, %v800
          %v802 = vrot.slane %v774, %v801
          %v803 = vlaneseq
          %v804 = vshrl.u32 %v803, 7
          %v805 = vsub.s32 0, %v804
          %v806 = vrot.slane %v776, %v805
          %v807 = vlaneseq
          %v808 = vshrl.u32 %v807, 7
          %v809 = vsub.s32 0, %v808
          %v810 = vrot.slane %v778, %v809
          %vm811 = vcmp.ge.s32.totalorder %v728, %v782
          %vm812 = vcmp.ge.s32.totalorder %v728, %v786
          %vm813 = vcmp.ge.s32.totalorder %v728, %v790
          %vm814 = vcmp.ge.s32.totalorder %v728, %v794
          %vm815 = vcmp.ge.s32.totalorder %v728, %v798
          %vm816 = vcmp.ge.s32.totalorder %v728, %v802
          %vm817 = vcmp.ge.s32.totalorder %v728, %v806
          %vm818 = vcmp.ge.s32.totalorder %v728, %v810
          %v819 = vsel %vm811, -1e+18, %v705
          %v820 = vsel %vm812, -1e+18, %v706
          %v821 = vsel %vm813, -1e+18, %v707
          %v822 = vsel %vm814, -1e+18, %v708
          %v823 = vsel %vm815, -1e+18, %v709
          %v824 = vsel %vm816, -1e+18, %v710
          %v825 = vsel %vm817, -1e+18, %v711
          %v826 = vsel %vm818, -1e+18, %v712
          %v827 = vld [vmem:[#allocation2] sm:$0xff]
          %v828 = vrot.slane %v819, 4
          %v829 = vmax.f32 %v819, %v828
          %v830 = vrot.slane %v829, 2
          %v831 = vmax.f32 %v829, %v830
          %v832 = vrot.slane %v831, 1
          %v833 = vmax.f32 %v831, %v832
          %v834 = vrot.slane %v820, 4
          %v835 = vmax.f32 %v820, %v834
          %v836 = vrot.slane %v835, 2
          %v837 = vmax.f32 %v835, %v836
          %v838 = vrot.slane %v837, 1
          %v839 = vmax.f32 %v837, %v838
          %v840 = vrot.slane %v821, 4
          %v841 = vmax.f32 %v821, %v840
          %v842 = vrot.slane %v841, 2
          %v843 = vmax.f32 %v841, %v842
          %v844 = vrot.slane %v843, 1
          %v845 = vmax.f32 %v843, %v844
          %v846 = vrot.slane %v822, 4
          %v847 = vmax.f32 %v822, %v846
          %v848 = vrot.slane %v847, 2
          %v849 = vmax.f32 %v847, %v848
          %v850 = vrot.slane %v849, 1
          %v851 = vmax.f32 %v849, %v850
          %v852 = vrot.slane %v823, 4
          %v853 = vmax.f32 %v823, %v852
          %v854 = vrot.slane %v853, 2
          %v855 = vmax.f32 %v853, %v854
          %v856 = vrot.slane %v855, 1
          %v857 = vmax.f32 %v855, %v856
          %v858 = vrot.slane %v824, 4
          %v859 = vmax.f32 %v824, %v858
          %v860 = vrot.slane %v859, 2
          %v861 = vmax.f32 %v859, %v860
          %v862 = vrot.slane %v861, 1
          %v863 = vmax.f32 %v861, %v862
          %v864 = vrot.slane %v825, 4
          %v865 = vmax.f32 %v825, %v864
          %v866 = vrot.slane %v865, 2
          %v867 = vmax.f32 %v865, %v866
          %v868 = vrot.slane %v867, 1
          %v869 = vmax.f32 %v867, %v868
          %v870 = vrot.slane %v826, 4
          %v871 = vmax.f32 %v826, %v870
          %v872 = vrot.slane %v871, 2
          %v873 = vmax.f32 %v871, %v872
          %v874 = vrot.slane %v873, 1
          %v875 = vmax.f32 %v873, %v874
          %vm884 = vcmask 1041409
          %v885 = vsel %vm884, %v839, %v833
          %vm886 = vcmask 1042434
          %v887 = vsel %vm886, %v845, %v885
          %vm888 = vcmask 1043459
          %v889 = vsel %vm888, %v851, %v887
          %vm890 = vcmask 1044484
          %v891 = vsel %vm890, %v857, %v889
          %vm892 = vcmask 1045509
          %v893 = vsel %vm892, %v863, %v891
          %vm894 = vcmask 1046534
          %v895 = vsel %vm894, %v869, %v893
          %vm896 = vcmask 1047559
          %v897 = vsel %vm896, %v875, %v895
          %v899 = vmax.f32 %v827, %v897
          %v900 = vsub.f32 %v827, %v899
          %v901 = vmul.f32 %v900, 1.442695
          %v902 = vpow.pop %v901
          %v904 = vcombine.high %v899, %v899
          %v906 = vunpack.c.l.s4 1966171168
          %v907 = vunpack.c.0.s8 %v906
          %v908 = vlaneseq
          %v909 = vshrl.u32 %v908, 7
          %v910 = vsub.s32 %v907, %v909
          %v911 = vrot.slane %v899, %v910
          %v913 = vunpack.c.l.s4 1966171168
          %v914 = vunpack.c.0.s8 %v913
          %v915 = vlaneseq
          %v916 = vshrl.u32 %v915, 7
          %v917 = vsub.s32 %v914, %v916
          %v918 = vrot.slane %v904, %v917
          %v919 = vcombine.high %v911, %v911
          %v920 = vcombine.high %v918, %v918
          %v922 = vunpack.c.l.s4 1966171168
          %v923 = vunpack.c.0.s8 %v922
          %v924 = vlaneseq
          %v925 = vshrl.u32 %v924, 7
          %v926 = vsub.s32 %v923, %v925
          %v927 = vrot.slane %v911, %v926
          %v929 = vunpack.c.l.s4 1966171168
          %v930 = vunpack.c.0.s8 %v929
          %v931 = vlaneseq
          %v932 = vshrl.u32 %v931, 7
          %v933 = vsub.s32 %v930, %v932
          %v934 = vrot.slane %v918, %v933
          %v936 = vunpack.c.l.s4 1966171168
          %v937 = vunpack.c.0.s8 %v936
          %v938 = vlaneseq
          %v939 = vshrl.u32 %v938, 7
          %v940 = vsub.s32 %v937, %v939
          %v941 = vrot.slane %v919, %v940
          %v943 = vunpack.c.l.s4 1966171168
          %v944 = vunpack.c.0.s8 %v943
          %v945 = vlaneseq
          %v946 = vshrl.u32 %v945, 7
          %v947 = vsub.s32 %v944, %v946
          %v948 = vrot.slane %v920, %v947
          %v949 = vcombine.high %v927, %v927
          %v950 = vcombine.high %v934, %v934
          %v951 = vcombine.high %v941, %v941
          %v952 = vcombine.high %v948, %v948
          %v953 = vlaneseq
          %v954 = vshrl.u32 %v953, 7
          %v955 = vsub.s32 0, %v954
          %v956 = vrot.slane %v927, %v955
          %v957 = vlaneseq
          %v958 = vshrl.u32 %v957, 7
          %v959 = vsub.s32 0, %v958
          %v960 = vrot.slane %v941, %v959
          %v961 = vlaneseq
          %v962 = vshrl.u32 %v961, 7
          %v963 = vsub.s32 0, %v962
          %v964 = vrot.slane %v949, %v963
          %v965 = vlaneseq
          %v966 = vshrl.u32 %v965, 7
          %v967 = vsub.s32 0, %v966
          %v968 = vrot.slane %v951, %v967
          %v969 = vlaneseq
          %v970 = vshrl.u32 %v969, 7
          %v971 = vsub.s32 0, %v970
          %v972 = vrot.slane %v934, %v971
          %v973 = vlaneseq
          %v974 = vshrl.u32 %v973, 7
          %v975 = vsub.s32 0, %v974
          %v976 = vrot.slane %v948, %v975
          %v977 = vlaneseq
          %v978 = vshrl.u32 %v977, 7
          %v979 = vsub.s32 0, %v978
          %v980 = vrot.slane %v950, %v979
          %v981 = vlaneseq
          %v982 = vshrl.u32 %v981, 7
          %v983 = vsub.s32 0, %v982
          %v984 = vrot.slane %v952, %v983
          %v993 = vsub.f32 %v819, %v956
          %v994 = vsub.f32 %v820, %v960
          %v995 = vsub.f32 %v821, %v964
          %v996 = vsub.f32 %v822, %v968
          %v997 = vsub.f32 %v823, %v972
          %v998 = vsub.f32 %v824, %v976
          %v999 = vsub.f32 %v825, %v980
          %v1000 = vsub.f32 %v826, %v984
          %v1001 = vmul.f32 %v993, 1.442695
          %v1002 = vpow.pop %v1001
          %v1003 = vmul.f32 %v994, 1.442695
          %v1004 = vpow.pop %v1003
          %v1005 = vmul.f32 %v995, 1.442695
          %v1006 = vpow.pop %v1005
          %v1007 = vmul.f32 %v996, 1.442695
          %v1008 = vpow.pop %v1007
          %v1009 = vmul.f32 %v997, 1.442695
          %v1010 = vpow.pop %v1009
          %v1011 = vmul.f32 %v998, 1.442695
          %v1012 = vpow.pop %v1011
          %v1013 = vmul.f32 %v999, 1.442695
          %v1014 = vpow.pop %v1013
          %v1015 = vmul.f32 %v1000, 1.442695
          %v1016 = vpow.pop %v1015
          %v1017 = vld [vmem:[#allocation3] sm:$0xff]
          %v1018 = vmul.f32 %v902, %v1017
          %v1019 = vrot.slane %v1002, 4
          %v1020 = vadd.f32 %v1002, %v1019
          %v1021 = vrot.slane %v1020, 2
          %v1022 = vadd.f32 %v1020, %v1021
          %v1023 = vrot.slane %v1022, 1
          %v1024 = vadd.f32 %v1022, %v1023
          %v1025 = vrot.slane %v1004, 4
          %v1026 = vadd.f32 %v1004, %v1025
          %v1027 = vrot.slane %v1026, 2
          %v1028 = vadd.f32 %v1026, %v1027
          %v1029 = vrot.slane %v1028, 1
          %v1030 = vadd.f32 %v1028, %v1029
          %v1031 = vrot.slane %v1006, 4
          %v1032 = vadd.f32 %v1006, %v1031
          %v1033 = vrot.slane %v1032, 2
          %v1034 = vadd.f32 %v1032, %v1033
          %v1035 = vrot.slane %v1034, 1
          %v1036 = vadd.f32 %v1034, %v1035
          %v1037 = vrot.slane %v1008, 4
          %v1038 = vadd.f32 %v1008, %v1037
          %v1039 = vrot.slane %v1038, 2
          %v1040 = vadd.f32 %v1038, %v1039
          %v1041 = vrot.slane %v1040, 1
          %v1042 = vadd.f32 %v1040, %v1041
          %v1043 = vrot.slane %v1010, 4
          %v1044 = vadd.f32 %v1010, %v1043
          %v1045 = vrot.slane %v1044, 2
          %v1046 = vadd.f32 %v1044, %v1045
          %v1047 = vrot.slane %v1046, 1
          %v1048 = vadd.f32 %v1046, %v1047
          %v1049 = vrot.slane %v1012, 4
          %v1050 = vadd.f32 %v1012, %v1049
          %v1051 = vrot.slane %v1050, 2
          %v1052 = vadd.f32 %v1050, %v1051
          %v1053 = vrot.slane %v1052, 1
          %v1054 = vadd.f32 %v1052, %v1053
          %v1055 = vrot.slane %v1014, 4
          %v1056 = vadd.f32 %v1014, %v1055
          %v1057 = vrot.slane %v1056, 2
          %v1058 = vadd.f32 %v1056, %v1057
          %v1059 = vrot.slane %v1058, 1
          %v1060 = vadd.f32 %v1058, %v1059
          %v1061 = vrot.slane %v1016, 4
          %v1062 = vadd.f32 %v1016, %v1061
          %v1063 = vrot.slane %v1062, 2
          %v1064 = vadd.f32 %v1062, %v1063
          %v1065 = vrot.slane %v1064, 1
          %v1066 = vadd.f32 %v1064, %v1065
          %v1075 = vsel %vm884, %v1030, %v1024
          %v1076 = vsel %vm886, %v1036, %v1075
          %v1077 = vsel %vm888, %v1042, %v1076
          %v1078 = vsel %vm890, %v1048, %v1077
          %v1079 = vsel %vm892, %v1054, %v1078
          %v1080 = vsel %vm894, %v1060, %v1079
          %v1081 = vsel %vm896, %v1066, %v1080
          %v1083 = vadd.f32 %v1018, %v1081
          %1084 = vst [vmem:[#allocation3] sm:$0xff] %v1083
          %1085 = vst [vmem:[#allocation2] sm:$0xff] %v899
          %v1086 = vld [vmem:[#allocation13] sm:$0xf]
          %v1087 = vld [vmem:[#allocation13 + $0x4] sm:$0xf]
          %v1088 = vld [vmem:[#allocation13 + $0x8] sm:$0xf]
          %v1089 = vld [vmem:[#allocation13 + $0xc] sm:$0xf]
          %v1090 = vld [vmem:[#allocation13 + $0x10] sm:$0xf]
          %v1091 = vld [vmem:[#allocation13 + $0x14] sm:$0xf]
          %v1092 = vld [vmem:[#allocation13 + $0x18] sm:$0xf]
          %v1093 = vld [vmem:[#allocation13 + $0x1c] sm:$0xf]
          %v1094 = vld [vmem:[#allocation13 + $0x20] sm:$0xf]
          %v1095 = vld [vmem:[#allocation13 + $0x24] sm:$0xf]
          %v1096 = vld [vmem:[#allocation13 + $0x28] sm:$0xf]
          %v1097 = vld [vmem:[#allocation13 + $0x2c] sm:$0xf]
          %v1098 = vld [vmem:[#allocation13 + $0x30] sm:$0xf]
          %v1099 = vld [vmem:[#allocation13 + $0x34] sm:$0xf]
          %v1100 = vld [vmem:[#allocation13 + $0x38] sm:$0xf]
          %v1101 = vld [vmem:[#allocation13 + $0x3c] sm:$0xf]
          %v1102 = vpack.c.bf16 %v1004, %v1002
          %v1103 = vpack.c.bf16 %v1008, %v1006
          %v1104 = vpack.c.bf16 %v1012, %v1010
          %v1105 = vpack.c.bf16 %v1016, %v1014
          %v1122 = vunpack.c.l.b16 %v1086
          %v1123 = vunpack.c.l.b16 %v1087
          %v1124 = vunpack.c.l.b16 %v1088
          %v1125 = vunpack.c.l.b16 %v1089
          %v1126 = vunpack.c.l.b16 %v1090
          %v1127 = vunpack.c.l.b16 %v1091
          %v1128 = vunpack.c.l.b16 %v1092
          %v1129 = vunpack.c.l.b16 %v1093
          %v1130 = vunpack.c.l.b16 %v1094
          %v1131 = vunpack.c.l.b16 %v1095
          %v1132 = vunpack.c.l.b16 %v1096
          %v1133 = vunpack.c.l.b16 %v1097
          %v1134 = vunpack.c.l.b16 %v1098
          %v1135 = vunpack.c.l.b16 %v1099
          %v1136 = vunpack.c.l.b16 %v1100
          %v1137 = vunpack.c.l.b16 %v1101
          %v1138 = vpack.c.b16 %v1123, %v1122
          %v1139 = vpack.c.b16 %v1125, %v1124
          %v1140 = vpack.c.b16 %v1127, %v1126
          %v1141 = vpack.c.b16 %v1129, %v1128
          %v1142 = vpack.c.b16 %v1131, %v1130
          %v1143 = vpack.c.b16 %v1133, %v1132
          %v1144 = vpack.c.b16 %v1135, %v1134
          %v1145 = vpack.c.b16 %v1137, %v1136
          %1154 = vmatprep.subr.bf16.mxu0 0
          %1155 = vmatpush1.bf16.msra.mxu0 %v1138
          %1156 = vmatprep.subr.bf16.mxu0 0
          %1157 = vmatpush1.bf16.msra.mxu0 %v1139
          %1158 = vmatprep.subr.bf16.mxu0 0
          %1159 = vmatpush1.bf16.msra.mxu0 %v1140
          %1160 = vmatprep.subr.bf16.mxu0 0
          %1161 = vmatpush1.bf16.msra.mxu0 %v1141
          %1162 = vmatprep.subr.bf16.mxu0 0
          %1163 = vmatpush1.bf16.msra.mxu0 %v1142
          %1164 = vmatprep.subr.bf16.mxu0 0
          %1165 = vmatpush1.bf16.msra.mxu0 %v1143
          %1166 = vmatprep.subr.bf16.mxu0 0
          %1167 = vmatpush1.bf16.msra.mxu0 %v1144
          %1168 = vmatprep.subr.bf16.mxu0 0
          %1169 = vmatpush1.bf16.msra.mxu0 %v1145
          %1170 = vmatprep.subr.bf16.mxu0 0
          %1171 = vmatpush1.bf16.msra.mxu0 0
          %1172 = vmatprep.subr.bf16.mxu0 0
          %1173 = vmatpush1.bf16.msra.mxu0 0
          %1174 = vmatprep.subr.bf16.mxu0 0
          %1175 = vmatpush1.bf16.msra.mxu0 0
          %1176 = vmatprep.subr.bf16.mxu0 0
          %1177 = vmatpush1.bf16.msra.mxu0 0
          %1178 = vmatprep.subr.bf16.mxu0 0
          %1179 = vmatpush1.bf16.msra.mxu0 0
          %1180 = vmatprep.subr.bf16.mxu0 0
          %1181 = vmatpush1.bf16.msra.mxu0 0
          %1182 = vmatprep.subr.bf16.mxu0 0
          %1183 = vmatpush1.bf16.msra.mxu0 0
          %1184 = vmatprep.subr.bf16.mxu0 0
          %1185 = vmatpush1.bf16.msra.mxu0 0
          %1186 = vmatprep.mubr.bf16.mxu0 0
          %1187 = vmatmul.mubr.bf16.gmra.mrb[0].mxu0 %v1102
          %v1188 = vpop.f32.mrb[0].mxu0
          %v1189 = vadd.f32 0.0, %v1188
          %v1190 = vpop.f32.mrb[0].mxu0
          %v1191 = vpop.f32.mrb[0].mxu0
          %v1192 = vadd.f32 0.0, %v1191
          %v1193 = vpop.f32.mrb[0].mxu0
          %1194 = vmatprep.mubr.bf16.mxu0 0
          %1195 = vmatmul.mubr.bf16.gmra.mrb[0].mxu0 %v1103
          %v1196 = vpop.f32.mrb[0].mxu0
          %v1197 = vadd.f32 0.0, %v1196
          %v1198 = vpop.f32.mrb[0].mxu0
          %v1199 = vpop.f32.mrb[0].mxu0
          %v1200 = vadd.f32 0.0, %v1199
          %v1201 = vpop.f32.mrb[0].mxu0
          %1202 = vmatprep.mubr.bf16.mxu0 0
          %1203 = vmatmul.mubr.bf16.gmra.mrb[0].mxu0 %v1104
          %v1204 = vpop.f32.mrb[0].mxu0
          %v1205 = vadd.f32 0.0, %v1204
          %v1206 = vpop.f32.mrb[0].mxu0
          %v1207 = vpop.f32.mrb[0].mxu0
          %v1208 = vadd.f32 0.0, %v1207
          %v1209 = vpop.f32.mrb[0].mxu0
          %1210 = vmatprep.mubr.bf16.mxu0 0
          %1211 = vmatmul.mubr.bf16.gmra.mrb[0].mxu0 %v1105
          %v1212 = vpop.f32.mrb[0].mxu0
          %v1213 = vadd.f32 0.0, %v1212
          %v1214 = vpop.f32.mrb[0].mxu0
          %v1215 = vpop.f32.mrb[0].mxu0
          %v1216 = vadd.f32 0.0, %v1215
          %v1217 = vpop.f32.mrb[0].mxu0
          %1218 = vdwg.mxu0
          %v1219 = vunpack.c.l.bf16 %v1086
          %v1220 = vunpack.c.l.bf16 %v1087
          %v1221 = vunpack.c.l.bf16 %v1088
          %v1222 = vunpack.c.l.bf16 %v1089
          %v1223 = vunpack.c.l.bf16 %v1090
          %v1224 = vunpack.c.l.bf16 %v1091
          %v1225 = vunpack.c.l.bf16 %v1092
          %v1226 = vunpack.c.l.bf16 %v1093
          %v1227 = vunpack.c.l.bf16 %v1094
          %v1228 = vunpack.c.l.bf16 %v1095
          %v1229 = vunpack.c.l.bf16 %v1096
          %v1230 = vunpack.c.l.bf16 %v1097
          %v1231 = vunpack.c.l.bf16 %v1098
          %v1232 = vunpack.c.l.bf16 %v1099
          %v1233 = vunpack.c.l.bf16 %v1100
          %v1234 = vunpack.c.l.bf16 %v1101
          %1235 = vmatprep.subr.mxu0 0.0
          %1236 = vmatpush1.msra.mxu0 %v1219
          %1237 = vmatprep.subr.mxu0 0.0
          %1238 = vmatpush1.msra.mxu0 %v1220
          %1239 = vmatprep.subr.mxu0 0.0
          %1240 = vmatpush1.msra.mxu0 %v1221
          %1241 = vmatprep.subr.mxu0 0.0
          %1242 = vmatpush1.msra.mxu0 %v1222
          %1243 = vmatprep.subr.mxu0 0.0
          %1244 = vmatpush1.msra.mxu0 %v1223
          %1245 = vmatprep.subr.mxu0 0.0
          %1246 = vmatpush1.msra.mxu0 %v1224
          %1247 = vmatprep.subr.mxu0 0.0
          %1248 = vmatpush1.msra.mxu0 %v1225
          %1249 = vmatprep.subr.mxu0 0.0
          %1250 = vmatpush1.msra.mxu0 %v1226
          %1251 = vmatprep.subr.mxu0 0.0
          %1252 = vmatpush1.msra.mxu0 %v1227
          %1253 = vmatprep.subr.mxu0 0.0
          %1254 = vmatpush1.msra.mxu0 %v1228
          %1255 = vmatprep.subr.mxu0 0.0
          %1256 = vmatpush1.msra.mxu0 %v1229
          %1257 = vmatprep.subr.mxu0 0.0
          %1258 = vmatpush1.msra.mxu0 %v1230
          %1259 = vmatprep.subr.mxu0 0.0
          %1260 = vmatpush1.msra.mxu0 %v1231
          %1261 = vmatprep.subr.mxu0 0.0
          %1262 = vmatpush1.msra.mxu0 %v1232
          %1263 = vmatprep.subr.mxu0 0.0
          %1264 = vmatpush1.msra.mxu0 %v1233
          %1265 = vmatprep.subr.mxu0 0.0
          %1266 = vmatpush1.msra.mxu0 %v1234
          %1267 = vmatprep.subr.mxu0 0.0
          %1268 = vmatpush1.msra.mxu0 0.0
          %1269 = vmatprep.subr.mxu0 0.0
          %1270 = vmatpush1.msra.mxu0 0.0
          %1271 = vmatprep.subr.mxu0 0.0
          %1272 = vmatpush1.msra.mxu0 0.0
          %1273 = vmatprep.subr.mxu0 0.0
          %1274 = vmatpush1.msra.mxu0 0.0
          %1275 = vmatprep.subr.mxu0 0.0
          %1276 = vmatpush1.msra.mxu0 0.0
          %1277 = vmatprep.subr.mxu0 0.0
          %1278 = vmatpush1.msra.mxu0 0.0
          %1279 = vmatprep.subr.mxu0 0.0
          %1280 = vmatpush1.msra.mxu0 0.0
          %1281 = vmatprep.subr.mxu0 0.0
          %1282 = vmatpush1.msra.mxu0 0.0
          %1283 = vmatprep.subr.mxu0 0.0
          %1284 = vmatpush1.msra.mxu0 0.0
          %1285 = vmatprep.subr.mxu0 0.0
          %1286 = vmatpush1.msra.mxu0 0.0
          %1287 = vmatprep.subr.mxu0 0.0
          %1288 = vmatpush1.msra.mxu0 0.0
          %1289 = vmatprep.subr.mxu0 0.0
          %1290 = vmatpush1.msra.mxu0 0.0
          %1291 = vmatprep.subr.mxu0 0.0
          %1292 = vmatpush1.msra.mxu0 0.0
          %1293 = vmatprep.subr.mxu0 0.0
          %1294 = vmatpush1.msra.mxu0 0.0
          %1295 = vmatprep.subr.mxu0 0.0
          %1296 = vmatpush1.msra.mxu0 0.0
          %1297 = vmatprep.subr.mxu0 0.0
          %1298 = vmatpush1.msra.mxu0 0.0
          %1299 = vmatprep.mubr.f32.mxu0 0.0
          %1300 = vmatmul.mubr.f32.gmra.mrb[0].mxu0 %v902
          %v1301 = vpop.f32.mrb[0].mxu0
          %v1302 = vadd.f32 0.0, %v1301
          %v1303 = vpop.f32.mrb[0].mxu0
          %1304 = vdwg.mxu0
          %v1305 = vld [vmem:[#allocation4] sm:$0xff]
          %v1306 = vmul.f32 %v1302, %v1305
          %v1307 = vmul.f32 %v1189, %v717
          %v1308 = vmul.f32 %v1192, %v718
          %v1309 = vmul.f32 %v1197, %v719
          %v1310 = vmul.f32 %v1200, %v720
          %v1311 = vmul.f32 %v1205, %v721
          %v1312 = vmul.f32 %v1208, %v722
          %v1313 = vmul.f32 %v1213, %v723
          %v1314 = vmul.f32 %v1216, %v724
          %v1315 = vrot.slane %v1307, 4
          %v1316 = vadd.f32 %v1307, %v1315
          %v1317 = vrot.slane %v1316, 2
          %v1318 = vadd.f32 %v1316, %v1317
          %v1319 = vrot.slane %v1318, 1
          %v1320 = vadd.f32 %v1318, %v1319
          %v1321 = vrot.slane %v1308, 4
          %v1322 = vadd.f32 %v1308, %v1321
          %v1323 = vrot.slane %v1322, 2
          %v1324 = vadd.f32 %v1322, %v1323
          %v1325 = vrot.slane %v1324, 1
          %v1326 = vadd.f32 %v1324, %v1325
          %v1327 = vrot.slane %v1309, 4
          %v1328 = vadd.f32 %v1309, %v1327
          %v1329 = vrot.slane %v1328, 2
          %v1330 = vadd.f32 %v1328, %v1329
          %v1331 = vrot.slane %v1330, 1
          %v1332 = vadd.f32 %v1330, %v1331
          %v1333 = vrot.slane %v1310, 4
          %v1334 = vadd.f32 %v1310, %v1333
          %v1335 = vrot.slane %v1334, 2
          %v1336 = vadd.f32 %v1334, %v1335
          %v1337 = vrot.slane %v1336, 1
          %v1338 = vadd.f32 %v1336, %v1337
          %v1339 = vrot.slane %v1311, 4
          %v1340 = vadd.f32 %v1311, %v1339
          %v1341 = vrot.slane %v1340, 2
          %v1342 = vadd.f32 %v1340, %v1341
          %v1343 = vrot.slane %v1342, 1
          %v1344 = vadd.f32 %v1342, %v1343
          %v1345 = vrot.slane %v1312, 4
          %v1346 = vadd.f32 %v1312, %v1345
          %v1347 = vrot.slane %v1346, 2
          %v1348 = vadd.f32 %v1346, %v1347
          %v1349 = vrot.slane %v1348, 1
          %v1350 = vadd.f32 %v1348, %v1349
          %v1351 = vrot.slane %v1313, 4
          %v1352 = vadd.f32 %v1313, %v1351
          %v1353 = vrot.slane %v1352, 2
          %v1354 = vadd.f32 %v1352, %v1353
          %v1355 = vrot.slane %v1354, 1
          %v1356 = vadd.f32 %v1354, %v1355
          %v1357 = vrot.slane %v1314, 4
          %v1358 = vadd.f32 %v1314, %v1357
          %v1359 = vrot.slane %v1358, 2
          %v1360 = vadd.f32 %v1358, %v1359
          %v1361 = vrot.slane %v1360, 1
          %v1362 = vadd.f32 %v1360, %v1361
          %v1371 = vsel %vm884, %v1326, %v1320
          %v1372 = vsel %vm886, %v1332, %v1371
          %v1373 = vsel %vm888, %v1338, %v1372
          %v1374 = vsel %vm890, %v1344, %v1373
          %v1375 = vsel %vm892, %v1350, %v1374
          %v1376 = vsel %vm894, %v1356, %v1375
          %v1377 = vsel %vm896, %v1362, %v1376
          %v1379 = vadd.f32 %v1306, %v1377
          %1380 = vst [vmem:[#allocation4] sm:$0xff] %v1379
        $region88: #{tpu_custom_call.1} parent=51 // pred_fallthru
          _
        // Predicated region
        $region89: #{tpu_custom_call.1} parent=51 // pred_check
          %p1381 = pneg %p456
        $region90: #{tpu_custom_call.1} parent=51 // pred_check_branch
          %1383 = sbr.rel (%p1381) target = $region92
        $region91: #{tpu_custom_call.1} parent=51 // pred_region
          %v1384 = vld [vmem:[%s8] sm:$0xff]
          %v1385 = vld [vmem:[#allocation3] sm:$0xff]
          %v1386 = vrcp.pop %v1385
          %v1387 = vld [vmem:[#allocation13] sm:$0xf]
          %v1388 = vld [vmem:[#allocation13 + $0x4] sm:$0xf]
          %v1389 = vld [vmem:[#allocation13 + $0x8] sm:$0xf]
          %v1390 = vld [vmem:[#allocation13 + $0xc] sm:$0xf]
          %v1391 = vld [vmem:[#allocation13 + $0x10] sm:$0xf]
          %v1392 = vld [vmem:[#allocation13 + $0x14] sm:$0xf]
          %v1393 = vld [vmem:[#allocation13 + $0x18] sm:$0xf]
          %v1394 = vld [vmem:[#allocation13 + $0x1c] sm:$0xf]
          %v1395 = vld [vmem:[#allocation13 + $0x20] sm:$0xf]
          %v1396 = vld [vmem:[#allocation13 + $0x24] sm:$0xf]
          %v1397 = vld [vmem:[#allocation13 + $0x28] sm:$0xf]
          %v1398 = vld [vmem:[#allocation13 + $0x2c] sm:$0xf]
          %v1399 = vld [vmem:[#allocation13 + $0x30] sm:$0xf]
          %v1400 = vld [vmem:[#allocation13 + $0x34] sm:$0xf]
          %v1401 = vld [vmem:[#allocation13 + $0x38] sm:$0xf]
          %v1402 = vld [vmem:[#allocation13 + $0x3c] sm:$0xf]
          %v1403 = vunpack.c.l.bf16 %v1387
          %v1404 = vunpack.c.l.bf16 %v1388
          %v1405 = vunpack.c.l.bf16 %v1389
          %v1406 = vunpack.c.l.bf16 %v1390
          %v1407 = vunpack.c.l.bf16 %v1391
          %v1408 = vunpack.c.l.bf16 %v1392
          %v1409 = vunpack.c.l.bf16 %v1393
          %v1410 = vunpack.c.l.bf16 %v1394
          %v1411 = vunpack.c.l.bf16 %v1395
          %v1412 = vunpack.c.l.bf16 %v1396
          %v1413 = vunpack.c.l.bf16 %v1397
          %v1414 = vunpack.c.l.bf16 %v1398
          %v1415 = vunpack.c.l.bf16 %v1399
          %v1416 = vunpack.c.l.bf16 %v1400
          %v1417 = vunpack.c.l.bf16 %v1401
          %v1418 = vunpack.c.l.bf16 %v1402
          %1419 = vmatprep.subr.mxu0 0.0
          %1420 = vmatpush1.msra.mxu0 %v1403
          %1421 = vmatprep.subr.mxu0 0.0
          %1422 = vmatpush1.msra.mxu0 %v1404
          %1423 = vmatprep.subr.mxu0 0.0
          %1424 = vmatpush1.msra.mxu0 %v1405
          %1425 = vmatprep.subr.mxu0 0.0
          %1426 = vmatpush1.msra.mxu0 %v1406
          %1427 = vmatprep.subr.mxu0 0.0
          %1428 = vmatpush1.msra.mxu0 %v1407
          %1429 = vmatprep.subr.mxu0 0.0
          %1430 = vmatpush1.msra.mxu0 %v1408
          %1431 = vmatprep.subr.mxu0 0.0
          %1432 = vmatpush1.msra.mxu0 %v1409
          %1433 = vmatprep.subr.mxu0 0.0
          %1434 = vmatpush1.msra.mxu0 %v1410
          %1435 = vmatprep.subr.mxu0 0.0
          %1436 = vmatpush1.msra.mxu0 %v1411
          %1437 = vmatprep.subr.mxu0 0.0
          %1438 = vmatpush1.msra.mxu0 %v1412
          %1439 = vmatprep.subr.mxu0 0.0
          %1440 = vmatpush1.msra.mxu0 %v1413
          %1441 = vmatprep.subr.mxu0 0.0
          %1442 = vmatpush1.msra.mxu0 %v1414
          %1443 = vmatprep.subr.mxu0 0.0
          %1444 = vmatpush1.msra.mxu0 %v1415
          %1445 = vmatprep.subr.mxu0 0.0
          %1446 = vmatpush1.msra.mxu0 %v1416
          %1447 = vmatprep.subr.mxu0 0.0
          %1448 = vmatpush1.msra.mxu0 %v1417
          %1449 = vmatprep.subr.mxu0 0.0
          %1450 = vmatpush1.msra.mxu0 %v1418
          %1451 = vmatprep.subr.mxu0 0.0
          %1452 = vmatpush1.msra.mxu0 0.0
          %1453 = vmatprep.subr.mxu0 0.0
          %1454 = vmatpush1.msra.mxu0 0.0
          %1455 = vmatprep.subr.mxu0 0.0
          %1456 = vmatpush1.msra.mxu0 0.0
          %1457 = vmatprep.subr.mxu0 0.0
          %1458 = vmatpush1.msra.mxu0 0.0
          %1459 = vmatprep.subr.mxu0 0.0
          %1460 = vmatpush1.msra.mxu0 0.0
          %1461 = vmatprep.subr.mxu0 0.0
          %1462 = vmatpush1.msra.mxu0 0.0
          %1463 = vmatprep.subr.mxu0 0.0
          %1464 = vmatpush1.msra.mxu0 0.0
          %1465 = vmatprep.subr.mxu0 0.0
          %1466 = vmatpush1.msra.mxu0 0.0
          %1467 = vmatprep.subr.mxu0 0.0
          %1468 = vmatpush1.msra.mxu0 0.0
          %1469 = vmatprep.subr.mxu0 0.0
          %1470 = vmatpush1.msra.mxu0 0.0
          %1471 = vmatprep.subr.mxu0 0.0
          %1472 = vmatpush1.msra.mxu0 0.0
          %1473 = vmatprep.subr.mxu0 0.0
          %1474 = vmatpush1.msra.mxu0 0.0
          %1475 = vmatprep.subr.mxu0 0.0
          %1476 = vmatpush1.msra.mxu0 0.0
          %1477 = vmatprep.subr.mxu0 0.0
          %1478 = vmatpush1.msra.mxu0 0.0
          %1479 = vmatprep.subr.mxu0 0.0
          %1480 = vmatpush1.msra.mxu0 0.0
          %1481 = vmatprep.subr.mxu0 0.0
          %1482 = vmatpush1.msra.mxu0 0.0
          %1483 = vmatprep.mubr.f32.mxu0 0.0
          %1484 = vmatmul.mubr.f32.gmra.mrb[0].mxu0 %v1386
          %v1485 = vpop.f32.mrb[0].mxu0
          %v1486 = vadd.f32 0.0, %v1485
          %v1487 = vpop.f32.mrb[0].mxu0
          %1488 = vdwg.mxu0
          %v1489 = vld [vmem:[#allocation4] sm:$0xff]
          %v1490 = vmul.f32 %v1489, %v1486
          %v1491 = vpack.c.bf16 %v1490, %v1490
          %v1492 = vld [vmem:[#allocation15] sm:$0xf]
          %v1493 = vld [vmem:[#allocation15 + $0x4] sm:$0xf]
          %v1494 = vld [vmem:[#allocation15 + $0x8] sm:$0xf]
          %v1495 = vld [vmem:[#allocation15 + $0xc] sm:$0xf]
          %v1496 = vld [vmem:[#allocation15 + $0x10] sm:$0xf]
          %v1497 = vld [vmem:[#allocation15 + $0x14] sm:$0xf]
          %v1498 = vld [vmem:[#allocation15 + $0x18] sm:$0xf]
          %v1499 = vld [vmem:[#allocation15 + $0x1c] sm:$0xf]
          %v1500 = vld [vmem:[#allocation15 + $0x20] sm:$0xf]
          %v1501 = vld [vmem:[#allocation15 + $0x24] sm:$0xf]
          %v1502 = vld [vmem:[#allocation15 + $0x28] sm:$0xf]
          %v1503 = vld [vmem:[#allocation15 + $0x2c] sm:$0xf]
          %v1504 = vld [vmem:[#allocation15 + $0x30] sm:$0xf]
          %v1505 = vld [vmem:[#allocation15 + $0x34] sm:$0xf]
          %v1506 = vld [vmem:[#allocation15 + $0x38] sm:$0xf]
          %v1507 = vld [vmem:[#allocation15 + $0x3c] sm:$0xf]
          %v1508 = vlaneseq
          %v1509 = vshrl.u32 %v1508, 7
          %v1510 = vsub.s32 2, %v1509
          %v1511 = vrot.slane %v1384, %v1510
          %v1528 = vunpack.c.l.b16 %v1492
          %v1529 = vunpack.c.l.b16 %v1493
          %v1530 = vunpack.c.l.b16 %v1494
          %v1531 = vunpack.c.l.b16 %v1495
          %v1532 = vunpack.c.l.b16 %v1496
          %v1533 = vunpack.c.l.b16 %v1497
          %v1534 = vunpack.c.l.b16 %v1498
          %v1535 = vunpack.c.l.b16 %v1499
          %v1536 = vunpack.c.l.b16 %v1500
          %v1537 = vunpack.c.l.b16 %v1501
          %v1538 = vunpack.c.l.b16 %v1502
          %v1539 = vunpack.c.l.b16 %v1503
          %v1540 = vunpack.c.l.b16 %v1504
          %v1541 = vunpack.c.l.b16 %v1505
          %v1542 = vunpack.c.l.b16 %v1506
          %v1543 = vunpack.c.l.b16 %v1507
          %v1544 = vpack.c.b16 %v1529, %v1528
          %v1545 = vpack.c.b16 %v1531, %v1530
          %v1546 = vpack.c.b16 %v1533, %v1532
          %v1547 = vpack.c.b16 %v1535, %v1534
          %v1548 = vpack.c.b16 %v1537, %v1536
          %v1549 = vpack.c.b16 %v1539, %v1538
          %v1550 = vpack.c.b16 %v1541, %v1540
          %v1551 = vpack.c.b16 %v1543, %v1542
          %1560 = vmatprep.subr.bf16.mxu0 0
          %1561 = vmatpush1.bf16.msra.mxu0 %v1544
          %1562 = vmatprep.subr.bf16.mxu0 0
          %1563 = vmatpush1.bf16.msra.mxu0 %v1545
          %1564 = vmatprep.subr.bf16.mxu0 0
          %1565 = vmatpush1.bf16.msra.mxu0 %v1546
          %1566 = vmatprep.subr.bf16.mxu0 0
          %1567 = vmatpush1.bf16.msra.mxu0 %v1547
          %1568 = vmatprep.subr.bf16.mxu0 0
          %1569 = vmatpush1.bf16.msra.mxu0 %v1548
          %1570 = vmatprep.subr.bf16.mxu0 0
          %1571 = vmatpush1.bf16.msra.mxu0 %v1549
          %1572 = vmatprep.subr.bf16.mxu0 0
          %1573 = vmatpush1.bf16.msra.mxu0 %v1550
          %1574 = vmatprep.subr.bf16.mxu0 0
          %1575 = vmatpush1.bf16.msra.mxu0 %v1551
          %1576 = vmatprep.subr.bf16.mxu0 0
          %1577 = vmatpush1.bf16.msra.mxu0 0
          %1578 = vmatprep.subr.bf16.mxu0 0
          %1579 = vmatpush1.bf16.msra.mxu0 0
          %1580 = vmatprep.subr.bf16.mxu0 0
          %1581 = vmatpush1.bf16.msra.mxu0 0
          %1582 = vmatprep.subr.bf16.mxu0 0
          %1583 = vmatpush1.bf16.msra.mxu0 0
          %1584 = vmatprep.subr.bf16.mxu0 0
          %1585 = vmatpush1.bf16.msra.mxu0 0
          %1586 = vmatprep.subr.bf16.mxu0 0
          %1587 = vmatpush1.bf16.msra.mxu0 0
          %1588 = vmatprep.subr.bf16.mxu0 0
          %1589 = vmatpush1.bf16.msra.mxu0 0
          %1590 = vmatprep.subr.bf16.mxu0 0
          %1591 = vmatpush1.bf16.msra.mxu0 0
          %1592 = vmatprep.mubr.bf16.mxu0 0
          %1593 = vmatmul.mubr.bf16.gmra.mrb[0].mxu0 %v1491
          %v1594 = vpop.f32.mrb[0].mxu0
          %v1595 = vadd.f32 %v1511, %v1594
          %v1596 = vpop.f32.mrb[0].mxu0
          %v1597 = vpop.f32.mrb[0].mxu0
          %v1598 = vpop.f32.mrb[0].mxu0
          %1599 = vdwg.mxu0
          %v1600 = vlaneseq
          %v1601 = vand.u32 %v1600, 127
          %vm1602 = vcmp.lt.s32.totalorder %v1601, 32
          %v1603 = vsel %vm1602, 1, 0
          %vm1604 = vcmp.eq.s32.totalorder %v1603, 1
          %v1605 = vsel %vm1604, %v1595, 0.0
          %1606 = vadd.xlane.f32.xlu0 %v1605
          %v1607 = vpop.xlane.xlu0 %1606
          %v1608 = vmul.f32 %v1607, 0.03125
          %v1609 = vsub.f32 %v1595, %v1608
          %v1610 = vsel %vm1604, %v1609, 0.0
          %v1611 = vmul.f32 %v1610, %v1610
          %1612 = vadd.xlane.f32.xlu0 %v1611
          %v1613 = vpop.xlane.xlu0 %1612
          %v1614 = vmul.f32 %v1613, 0.03125
          %v1615 = vadd.f32 %v1614, 1e-06
          %v1616 = vrsqrt.pop %v1615
          %v1617 = vmul.f32 %v1610, %v1616
          %v1618 = vlaneseq
          %v1619 = vshrl.u32 %v1618, 7
          %v1620 = vsub.s32 3, %v1619
          %v1621 = vrot.slane %v1384, %v1620
          %v1622 = vmul.f32 %v1617, %v1621
          %v1623 = vlaneseq
          %v1624 = vshrl.u32 %v1623, 7
          %v1625 = vsub.s32 4, %v1624
          %v1626 = vrot.slane %v1384, %v1625
          %v1627 = vadd.f32 %v1622, %v1626
          %v1628 = vpack.c.bf16 %v1627, %v1627
          %v1629 = vld [vmem:[#allocation16] sm:$0xf]
          %v1630 = vld [vmem:[#allocation16 + $0x4] sm:$0xf]
          %v1631 = vld [vmem:[#allocation16 + $0x8] sm:$0xf]
          %v1632 = vld [vmem:[#allocation16 + $0xc] sm:$0xf]
          %v1633 = vld [vmem:[#allocation16 + $0x10] sm:$0xf]
          %v1634 = vld [vmem:[#allocation16 + $0x14] sm:$0xf]
          %v1635 = vld [vmem:[#allocation16 + $0x18] sm:$0xf]
          %v1636 = vld [vmem:[#allocation16 + $0x1c] sm:$0xf]
          %v1637 = vld [vmem:[#allocation16 + $0x20] sm:$0xf]
          %v1638 = vld [vmem:[#allocation16 + $0x24] sm:$0xf]
          %v1639 = vld [vmem:[#allocation16 + $0x28] sm:$0xf]
          %v1640 = vld [vmem:[#allocation16 + $0x2c] sm:$0xf]
          %v1641 = vld [vmem:[#allocation16 + $0x30] sm:$0xf]
          %v1642 = vld [vmem:[#allocation16 + $0x34] sm:$0xf]
          %v1643 = vld [vmem:[#allocation16 + $0x38] sm:$0xf]
          %v1644 = vld [vmem:[#allocation16 + $0x3c] sm:$0xf]
          %v1645 = vlaneseq
          %v1646 = vshrl.u32 %v1645, 7
          %v1647 = vsub.s32 5, %v1646
          %v1648 = vrot.slane %v1384, %v1647
          %v1665 = vunpack.c.l.b16 %v1629
          %v1666 = vunpack.c.l.b16 %v1630
          %v1667 = vunpack.c.l.b16 %v1631
          %v1668 = vunpack.c.l.b16 %v1632
          %v1669 = vunpack.c.l.b16 %v1633
          %v1670 = vunpack.c.l.b16 %v1634
          %v1671 = vunpack.c.l.b16 %v1635
          %v1672 = vunpack.c.l.b16 %v1636
          %v1673 = vunpack.c.l.b16 %v1637
          %v1674 = vunpack.c.l.b16 %v1638
          %v1675 = vunpack.c.l.b16 %v1639
          %v1676 = vunpack.c.l.b16 %v1640
          %v1677 = vunpack.c.l.b16 %v1641
          %v1678 = vunpack.c.l.b16 %v1642
          %v1679 = vunpack.c.l.b16 %v1643
          %v1680 = vunpack.c.l.b16 %v1644
          %v1681 = vpack.c.b16 %v1666, %v1665
          %v1682 = vpack.c.b16 %v1668, %v1667
          %v1683 = vpack.c.b16 %v1670, %v1669
          %v1684 = vpack.c.b16 %v1672, %v1671
          %v1685 = vpack.c.b16 %v1674, %v1673
          %v1686 = vpack.c.b16 %v1676, %v1675
          %v1687 = vpack.c.b16 %v1678, %v1677
          %v1688 = vpack.c.b16 %v1680, %v1679
          %1697 = vmatprep.subr.bf16.mxu0 0
          %1698 = vmatpush1.bf16.msra.mxu0 %v1681
          %1699 = vmatprep.subr.bf16.mxu0 0
          %1700 = vmatpush1.bf16.msra.mxu0 %v1682
          %1701 = vmatprep.subr.bf16.mxu0 0
          %1702 = vmatpush1.bf16.msra.mxu0 %v1683
          %1703 = vmatprep.subr.bf16.mxu0 0
          %1704 = vmatpush1.bf16.msra.mxu0 %v1684
          %1705 = vmatprep.subr.bf16.mxu0 0
          %1706 = vmatpush1.bf16.msra.mxu0 %v1685
          %1707 = vmatprep.subr.bf16.mxu0 0
          %1708 = vmatpush1.bf16.msra.mxu0 %v1686
          %1709 = vmatprep.subr.bf16.mxu0 0
          %1710 = vmatpush1.bf16.msra.mxu0 %v1687
          %1711 = vmatprep.subr.bf16.mxu0 0
          %1712 = vmatpush1.bf16.msra.mxu0 %v1688
          %1713 = vmatprep.subr.bf16.mxu0 0
          %1714 = vmatpush1.bf16.msra.mxu0 0
          %1715 = vmatprep.subr.bf16.mxu0 0
          %1716 = vmatpush1.bf16.msra.mxu0 0
          %1717 = vmatprep.subr.bf16.mxu0 0
          %1718 = vmatpush1.bf16.msra.mxu0 0
          %1719 = vmatprep.subr.bf16.mxu0 0
          %1720 = vmatpush1.bf16.msra.mxu0 0
          %1721 = vmatprep.subr.bf16.mxu0 0
          %1722 = vmatpush1.bf16.msra.mxu0 0
          %1723 = vmatprep.subr.bf16.mxu0 0
          %1724 = vmatpush1.bf16.msra.mxu0 0
          %1725 = vmatprep.subr.bf16.mxu0 0
          %1726 = vmatpush1.bf16.msra.mxu0 0
          %1727 = vmatprep.subr.bf16.mxu0 0
          %1728 = vmatpush1.bf16.msra.mxu0 0
          %1729 = vmatprep.mubr.bf16.mxu0 0
          %1730 = vmatmul.mubr.bf16.gmra.mrb[0].mxu0 %v1628
          %v1731 = vpop.f32.mrb[0].mxu0
          %v1732 = vadd.f32 %v1648, %v1731
          %v1733 = vpop.f32.mrb[0].mxu0
          %v1734 = vpop.f32.mrb[0].mxu0
          %v1735 = vpop.f32.mrb[0].mxu0
          %1736 = vdwg.mxu0
          %v1737 = vmax.f32 %v1732, 0.0
          %v1738 = vpack.c.bf16 %v1737, %v1737
          %v1739 = vld [vmem:[#allocation18] sm:$0xf]
          %v1740 = vld [vmem:[#allocation18 + $0x4] sm:$0xf]
          %v1741 = vld [vmem:[#allocation18 + $0x8] sm:$0xf]
          %v1742 = vld [vmem:[#allocation18 + $0xc] sm:$0xf]
          %v1743 = vld [vmem:[#allocation18 + $0x10] sm:$0xf]
          %v1744 = vld [vmem:[#allocation18 + $0x14] sm:$0xf]
          %v1745 = vld [vmem:[#allocation18 + $0x18] sm:$0xf]
          %v1746 = vld [vmem:[#allocation18 + $0x1c] sm:$0xf]
          %v1747 = vld [vmem:[#allocation18 + $0x20] sm:$0xf]
          %v1748 = vld [vmem:[#allocation18 + $0x24] sm:$0xf]
          %v1749 = vld [vmem:[#allocation18 + $0x28] sm:$0xf]
          %v1750 = vld [vmem:[#allocation18 + $0x2c] sm:$0xf]
          %v1751 = vld [vmem:[#allocation18 + $0x30] sm:$0xf]
          %v1752 = vld [vmem:[#allocation18 + $0x34] sm:$0xf]
          %v1753 = vld [vmem:[#allocation18 + $0x38] sm:$0xf]
          %v1754 = vld [vmem:[#allocation18 + $0x3c] sm:$0xf]
          %v1755 = vlaneseq
          %v1756 = vshrl.u32 %v1755, 7
          %v1757 = vsub.s32 6, %v1756
          %v1758 = vrot.slane %v1384, %v1757
          %v1775 = vunpack.c.l.b16 %v1739
          %v1776 = vunpack.c.l.b16 %v1740
          %v1777 = vunpack.c.l.b16 %v1741
          %v1778 = vunpack.c.l.b16 %v1742
          %v1779 = vunpack.c.l.b16 %v1743
          %v1780 = vunpack.c.l.b16 %v1744
          %v1781 = vunpack.c.l.b16 %v1745
          %v1782 = vunpack.c.l.b16 %v1746
          %v1783 = vunpack.c.l.b16 %v1747
          %v1784 = vunpack.c.l.b16 %v1748
          %v1785 = vunpack.c.l.b16 %v1749
          %v1786 = vunpack.c.l.b16 %v1750
          %v1787 = vunpack.c.l.b16 %v1751
          %v1788 = vunpack.c.l.b16 %v1752
          %v1789 = vunpack.c.l.b16 %v1753
          %v1790 = vunpack.c.l.b16 %v1754
          %v1791 = vpack.c.b16 %v1776, %v1775
          %v1792 = vpack.c.b16 %v1778, %v1777
          %v1793 = vpack.c.b16 %v1780, %v1779
          %v1794 = vpack.c.b16 %v1782, %v1781
          %v1795 = vpack.c.b16 %v1784, %v1783
          %v1796 = vpack.c.b16 %v1786, %v1785
          %v1797 = vpack.c.b16 %v1788, %v1787
          %v1798 = vpack.c.b16 %v1790, %v1789
          %1807 = vmatprep.subr.bf16.mxu0 0
          %1808 = vmatpush1.bf16.msra.mxu0 %v1791
          %1809 = vmatprep.subr.bf16.mxu0 0
          %1810 = vmatpush1.bf16.msra.mxu0 %v1792
          %1811 = vmatprep.subr.bf16.mxu0 0
          %1812 = vmatpush1.bf16.msra.mxu0 %v1793
          %1813 = vmatprep.subr.bf16.mxu0 0
          %1814 = vmatpush1.bf16.msra.mxu0 %v1794
          %1815 = vmatprep.subr.bf16.mxu0 0
          %1816 = vmatpush1.bf16.msra.mxu0 %v1795
          %1817 = vmatprep.subr.bf16.mxu0 0
          %1818 = vmatpush1.bf16.msra.mxu0 %v1796
          %1819 = vmatprep.subr.bf16.mxu0 0
          %1820 = vmatpush1.bf16.msra.mxu0 %v1797
          %1821 = vmatprep.subr.bf16.mxu0 0
          %1822 = vmatpush1.bf16.msra.mxu0 %v1798
          %1823 = vmatprep.subr.bf16.mxu0 0
          %1824 = vmatpush1.bf16.msra.mxu0 0
          %1825 = vmatprep.subr.bf16.mxu0 0
          %1826 = vmatpush1.bf16.msra.mxu0 0
          %1827 = vmatprep.subr.bf16.mxu0 0
          %1828 = vmatpush1.bf16.msra.mxu0 0
          %1829 = vmatprep.subr.bf16.mxu0 0
          %1830 = vmatpush1.bf16.msra.mxu0 0
          %1831 = vmatprep.subr.bf16.mxu0 0
          %1832 = vmatpush1.bf16.msra.mxu0 0
          %1833 = vmatprep.subr.bf16.mxu0 0
          %1834 = vmatpush1.bf16.msra.mxu0 0
          %1835 = vmatprep.subr.bf16.mxu0 0
          %1836 = vmatpush1.bf16.msra.mxu0 0
          %1837 = vmatprep.subr.bf16.mxu0 0
          %1838 = vmatpush1.bf16.msra.mxu0 0
          %1839 = vmatprep.mubr.bf16.mxu0 0
          %1840 = vmatmul.mubr.bf16.gmra.mrb[0].mxu0 %v1738
          %v1841 = vpop.f32.mrb[0].mxu0
          %v1842 = vadd.f32 %v1758, %v1841
          %v1843 = vpop.f32.mrb[0].mxu0
          %v1844 = vpop.f32.mrb[0].mxu0
          %v1845 = vpop.f32.mrb[0].mxu0
          %1846 = vdwg.mxu0
          %v1847 = vadd.f32 %v1842, %v1595
          %1848 = vst [vmem:[%s453] sm:$0xff] %v1847
        $region92: #{tpu_custom_call.1} parent=51 // pred_fallthru
          _
        %s1849 = sand.u32 %s235, 1
        %s1850 = scalar_lea.sflag [#allocation9], %s1849
        %s1851 = sand.u32 %s235, 1
        %s1852 = smul.addr %s1851, 8
        %s1853 = scalar_lea.vmem [#allocation19], %s1852
        // Predicated region
        $region93: #{tpu_custom_call.1} parent=51 // pred_check
          %p1854 = pneg %p245
        $region94: #{tpu_custom_call.1} parent=51 // pred_check_branch
          %1856 = sbr.rel (%p1854) target = $region96
        $region95: #{tpu_custom_call.1} parent=51 // pred_region
          %s1858 = ssub.s32 128, 128
          %1859 = vsyncadd %s1850, %s1858
          %s1860 = smul.addr %s39, 128
          %s1861 = scalar_lea.hbm %s9, %s1860
          %s1863 = sshll.u32 %s1853, 4
          %s1864 = int_to_ptr.vmem [resolvable:$true] %s1863
          %1866 = dma.vmem_to_hbm [thread:$0]  %s1864, 128, %s1861, %s1850
        $region96: #{tpu_custom_call.1} parent=51 // pred_fallthru
          _
      $region52: #{tpu_custom_call.1} parent=5 // pred_fallthru
        _
      %p1867 = scmp.le.s32.totalorder 2, %s30
      // Predicated region
      $region97: #{tpu_custom_call.1} parent=5 // pred_check
        %p1868 = pneg %p1867
      $region98: #{tpu_custom_call.1} parent=5 // pred_check_branch
        %1870 = sbr.rel (%p1868) target = $region100
      $region99: #{tpu_custom_call.1} parent=5 // pred_region
        %s1871 = ssub.s32 %s30, 2
        // Predicated region
        $region101: #{tpu_custom_call.1} parent=99 // pred_check
          %p1872 = pneg %p251
        $region102: #{tpu_custom_call.1} parent=99 // pred_check_branch
          %1874 = sbr.rel (%p1872) target = $region104
        $region103: #{tpu_custom_call.1} parent=99 // pred_region
          %s1875 = sand.u32 %s236, 1
          %s1876 = scalar_lea.sflag [#allocation9], %s1875
          %s1877 = sand.u32 %s236, 1
          %s1878 = smul.addr %s1877, 8
          %s1879 = scalar_lea.vmem [#allocation19], %s1878
          %1880 = dma.done %s1876, 128
        $region104: #{tpu_custom_call.1} parent=99 // pred_fallthru
          _
      $region100: #{tpu_custom_call.1} parent=5 // pred_fallthru
        _
    $region6: #{tpu_custom_call.1} parent=1 // loop_footer
      %s34 = sadd.s32 1, %s30
    $region7: #{tpu_custom_call.1} parent=1 // loop_footer_branch
      %29 = sbr.rel target = $region3
    $region8: #{tpu_custom_call.1} parent=1 // loop_exit
      _
    %1881 = vsyncpa [#allocation8], 1
    %s1882 = scalar_lea.sflag [#allocation8], 1
    %1883 = vsyncpa %s1882, 1
    %1884 = vsyncpa [#allocation11], 1
    %s1885 = scalar_lea.sflag [#allocation11], 1
    %1886 = vsyncpa %s1885, 1
    %1887 = vsyncpa [#allocation14], 1
    %1888 = vsyncpa [#allocation17], 1
    %1889 = vsyncpa [#allocation9], 1
    %s1890 = scalar_lea.sflag [#allocation9], 1
    %1891 = vsyncpa %s1890, 1

</llo_original>
